<compile_context>
chip_gen: v6e
topology: v6e:2x2x1
jax: 0.10.0
libtpu: 0.0.40
codegen_flags: <defaults>
</compile_context>

<pallas_src>
import functools

import jax
import jax.numpy as jnp
from jax import lax
from jax.experimental import pallas as pl
from jax.experimental.pallas import tpu as pltpu

NEG_SLOPE = 0.3          # nn.LeakyReLU(0.3) in the reference module
BN_EPS = 1e-3            # BatchNorm2d(eps=0.001)

# column layout of the packed per-expanded-channel parameter array (C_exp, 16)
_B_EXP, _G1, _B1, _B_DW, _G2, _B2, _B_SE2, _WDW0 = 0, 1, 2, 3, 4, 5, 6, 7


def _leaky(x):
    return jnp.where(x >= 0, x, NEG_SLOPE * x)


def _fma_matmul(w, x):
    """(M, K) @ (K, N) as an unrolled VPU broadcast-FMA over the tiny K dim."""
    k = w.shape[1]
    acc = w[:, 0:1] * x[0:1, :]
    for i in range(1, k):
        acc = acc + w[:, i:i + 1] * x[i:i + 1, :]
    return acc


def _bn_scale_shift(y, n, gamma, beta):
    """Train-mode BatchNorm (biased variance) via one-pass sum / sum-of-squares.

    Returns (scale, shift) per channel so that BN(y) == y * scale + shift.
    """
    s = jnp.sum(y, axis=1, keepdims=True)
    q = jnp.sum(y * y, axis=1, keepdims=True)
    mean = s * (1.0 / n)
    var = jnp.maximum(q * (1.0 / n) - mean * mean, 0.0)
    scale = lax.rsqrt(var + BN_EPS) * gamma
    return scale, beta - mean * scale


def _fused_block_kernel(xf_ref, xt_ref, wexp_ref, pexp_ref,
                        wse1_ref, bse1_ref, wse2_ref, wun_ref, pout_ref,
                        out_ref, *, batch, s2):
    c_in = xf_ref.shape[0]
    n_full = xf_ref.shape[1]
    n2 = out_ref.shape[1]

    w_exp = wexp_ref[...]                              # (C_exp, C_in)
    b_exp = pexp_ref[:, _B_EXP:_B_EXP + 1]             # (C_exp, 1) columns
    g1 = pexp_ref[:, _G1:_G1 + 1]
    be1 = pexp_ref[:, _B1:_B1 + 1]
    b_dw = pexp_ref[:, _B_DW:_B_DW + 1]
    g2 = pexp_ref[:, _G2:_G2 + 1]
    be2 = pexp_ref[:, _B2:_B2 + 1]
    b_se2 = pexp_ref[:, _B_SE2:_B_SE2 + 1]

    # ---- expander (1x1 conv) at full resolution: BN1 batch statistics ------
    y1 = _fma_matmul(w_exp, xf_ref[...]) + b_exp       # (C_exp, N)
    scale1, shift1 = _bn_scale_shift(y1, n_full, g1, be1)
    # fold BN1 into the expander weights so each tap is one FMA pass
    w_exp_f = w_exp * scale1                           # (C_exp, C_in)
    b_exp_f = b_exp * scale1 + shift1                  # (C_exp, 1)

    # ---- depthwise 3x3 / stride 2 / pad 1: 9-tap per-channel MAC ------------
    # Tap k carries the zero-padded, stride-2 gathered input phase plus a
    # validity row.  Padded positions must contribute 0 (the reference pads
    # the *post* BN1+LeakyReLU activation with zeros), hence the mask multiply.
    acc = None
    for k in range(9):
        tap = xt_ref[k]                                # (C_in + 1, N2)
        a_k = _leaky(_fma_matmul(w_exp_f, tap[0:c_in, :]) + b_exp_f)
        a_k = a_k * tap[c_in:c_in + 1, :]              # zero the padding ring
        term = pexp_ref[:, _WDW0 + k:_WDW0 + k + 1] * a_k
        acc = term if acc is None else acc + term
    z2 = acc + b_dw                                    # (C_exp, N2)

    # ---- BN2 + LeakyReLU -----------------------------------------------------
    scale2, shift2 = _bn_scale_shift(z2, n2, g2, be2)
    y2 = _leaky(z2 * scale2 + shift2)                  # (C_exp, N2)

    # ---- SqueezeExcite: per-image pool -> FC -> LReLU -> FC -> sigmoid ------
    w_se1 = wse1_ref[...]                              # (C_exp//4, C_exp)
    b_se1 = bse1_ref[...]                              # (C_exp//4, 1)
    w_se2 = wse2_ref[...]                              # (C_exp, C_exp//4)
    inv_s2 = 1.0 / s2
    segs = []
    for b in range(batch):                             # static per-batch lane slices
        seg = y2[:, b * s2:(b + 1) * s2]               # (C_exp, S2)
        pool_b = jnp.sum(seg, axis=1, keepdims=True) * inv_s2      # (C_exp, 1)
        h_b = _leaky(_fma_matmul(w_se1, pool_b) + b_se1)           # (C_exp//4, 1)
        gate_b = jax.nn.sigmoid(_fma_matmul(w_se2, h_b) + b_se2)   # (C_exp, 1)
        segs.append(seg * gate_b)
    y3 = jnp.concatenate(segs, axis=1)                 # (C_exp, N2)

    # ---- unexpander (1x1 conv) + BN3 ----------------------------------------
    b_un = pout_ref[:, 0:1]
    g3 = pout_ref[:, 1:2]
    be3 = pout_ref[:, 2:3]
    z3 = _fma_matmul(wun_ref[...], y3) + b_un          # (C_out, N2)
    scale3, shift3 = _bn_scale_shift(z3, n2, g3, be3)
    out_ref[...] = z3 * scale3 + shift3


def init_params(key, c_in, c_exp, c_out):
    ks = jax.random.split(key, 16)
    f32 = jnp.float32
    return {
        # torch layouts: conv (C_out, C_in[, kH, kW]), linear (out, in)
        "w_exp": jax.random.normal(ks[0], (c_exp, c_in), f32) * 0.2,
        "b_exp": jax.random.normal(ks[1], (c_exp,), f32) * 0.1,
        "w_dw": jax.random.normal(ks[2], (c_exp, 3, 3), f32) * 0.2,
        "b_dw": jax.random.normal(ks[3], (c_exp,), f32) * 0.1,
        "w_se1": jax.random.normal(ks[4], (c_exp // 4, c_exp), f32) * 0.2,
        "b_se1": jax.random.normal(ks[5], (c_exp // 4,), f32) * 0.1,
        "w_se2": jax.random.normal(ks[6], (c_exp, c_exp // 4), f32) * 0.2,
        "b_se2": jax.random.normal(ks[7], (c_exp,), f32) * 0.1,
        "w_un": jax.random.normal(ks[8], (c_out, c_exp), f32) * 0.2,
        "b_un": jax.random.normal(ks[9], (c_out,), f32) * 0.1,
        "bn1_g": 1.0 + 0.1 * jax.random.normal(ks[10], (c_exp,), f32),
        "bn1_b": 0.1 * jax.random.normal(ks[11], (c_exp,), f32),
        "bn2_g": 1.0 + 0.1 * jax.random.normal(ks[12], (c_exp,), f32),
        "bn2_b": 0.1 * jax.random.normal(ks[13], (c_exp,), f32),
        "bn3_g": 1.0 + 0.1 * jax.random.normal(ks[14], (c_out,), f32),
        "bn3_b": 0.1 * jax.random.normal(ks[15], (c_out,), f32),
    }


def block_forward(x_nchw, params):
    B, C_in, H, W = x_nchw.shape
    C_exp = params["w_exp"].shape[0]
    C_out = params["w_un"].shape[0]
    C_r = params["w_se1"].shape[0]
    assert H % 2 == 0 and W % 2 == 0
    H2, W2 = H // 2, W // 2
    S2 = H2 * W2                    # SE AvgPool2d(channel_size//2) == full H2 x W2 pool
    N = B * H * W
    N2 = B * S2
    f32 = jnp.float32

    # ---- channel-major, lane-dense layout glue (pure data movement) ---------
    xcf = jnp.transpose(x_nchw, (1, 0, 2, 3)).astype(f32)         # (C_in, B, H, W)
    x_full = xcf.reshape(C_in, N)
    # append an all-ones "validity" channel, zero-pad, gather the 9 stride-2
    # tap phases of the *small* C_in input (the expander/BN1/LReLU are pointwise
    # so they commute with this gather; the ones channel becomes the pad mask).
    xa = jnp.concatenate([xcf, jnp.ones((1, B, H, W), f32)], axis=0)
    xap = jnp.pad(xa, ((0, 0), (0, 0), (1, 1), (1, 1)))
    taps = [xap[:, :, ki:ki + H:2, kj:kj + W:2]
            for ki in range(3) for kj in range(3)]                # each (C_in+1, B, H2, W2)
    x_taps = jnp.stack(taps, axis=0).reshape(9, C_in + 1, N2)

    # ---- packed per-channel parameter columns --------------------------------
    w_dw_cols = params["w_dw"].reshape(C_exp, 9)                  # col k = w[:, ki, kj], k=3*ki+kj
    pexp = jnp.concatenate(
        [jnp.stack([params["b_exp"], params["bn1_g"], params["bn1_b"],
                    params["b_dw"], params["bn2_g"], params["bn2_b"],
                    params["b_se2"]], axis=1),
         w_dw_cols], axis=1)                                      # (C_exp, 16)
    pout = jnp.stack([params["b_un"], params["bn3_g"], params["bn3_b"]], axis=1)  # (C_out, 3)

    kernel = functools.partial(_fused_block_kernel, batch=B, s2=S2)
    vmem = pltpu.MemorySpace.VMEM
    in_specs = [pl.BlockSpec(memory_space=vmem)] * 9

    flops = int(2 * C_exp * C_in * N
                + 9 * (2 * C_exp * C_in + 4 * C_exp) * N2
                + 2 * C_out * C_exp * N2
                + 10 * C_exp * (N + 3 * N2))
    bytes_accessed = int(4 * (C_in * N + 9 * (C_in + 1) * N2 + C_out * N2 + 4096))

    out2d = pl.pallas_call(
        kernel,
        out_shape=jax.ShapeDtypeStruct((C_out, N2), f32),
        in_specs=in_specs,
        out_specs=pl.BlockSpec(memory_space=vmem),
        compiler_params=pltpu.CompilerParams(vmem_limit_bytes=32 * 1024 * 1024),
        cost_estimate=pl.CostEstimate(flops=flops,
                                      transcendentals=int(B * C_exp + 8),
                                      bytes_accessed=bytes_accessed),
    )(x_full, x_taps, params["w_exp"], pexp,
      params["w_se1"], params["b_se1"].reshape(C_r, 1), params["w_se2"],
      params["w_un"], pout)

    return jnp.transpose(out2d.reshape(C_out, B, H2, W2), (1, 0, 2, 3))


# ---------------- pure-JAX reference (for in-script validation) --------------
def _reference_forward(x, p):
    hp = lax.Precision.HIGHEST

    def bn(y, g, b):
        mean = jnp.mean(y, axis=(0, 2, 3), keepdims=True)
        var = jnp.mean((y - mean) ** 2, axis=(0, 2, 3), keepdims=True)
        return ((y - mean) * lax.rsqrt(var + BN_EPS) * g.reshape(1, -1, 1, 1)
                + b.reshape(1, -1, 1, 1))

    def lrelu(v):
        return jnp.where(v >= 0, v, NEG_SLOPE * v)

    y = jnp.einsum('bchw,oc->bohw', x, p["w_exp"], precision=hp) \
        + p["b_exp"].reshape(1, -1, 1, 1)
    y = lrelu(bn(y, p["bn1_g"], p["bn1_b"]))
    y = lax.conv_general_dilated(
        y, p["w_dw"].reshape(-1, 1, 3, 3), window_strides=(2, 2),
        padding=((1, 1), (1, 1)), dimension_numbers=('NCHW', 'OIHW', 'NCHW'),
        feature_group_count=y.shape[1], precision=hp) + p["b_dw"].reshape(1, -1, 1, 1)
    y = lrelu(bn(y, p["bn2_g"], p["bn2_b"]))
    pool = jnp.mean(y, axis=(2, 3))                               # full-window AvgPool2d
    h = lrelu(jnp.einsum('bc,rc->br', pool, p["w_se1"], precision=hp) + p["b_se1"])
    s = jax.nn.sigmoid(jnp.einsum('br,cr->bc', h, p["w_se2"], precision=hp) + p["b_se2"])
    y = y * s[:, :, None, None]
    y = jnp.einsum('bchw,oc->bohw', y, p["w_un"], precision=hp) \
        + p["b_un"].reshape(1, -1, 1, 1)
    return bn(y, p["bn3_g"], p["bn3_b"])


if __name__ == "__main__":
    key = jax.random.PRNGKey(0)
    kx, kp = jax.random.split(key)

    # Block(input_channels=4, expanded_channels=16, channel_size=16, output_channels=8)
    B, C_in, H = 2, 4, 16
    C_exp, C_out = 16, 8

    x = jax.random.normal(kx, (B, C_in, H, H), jnp.float32)       # NCHW input
    params = init_params(kp, C_in, C_exp, C_out)

    y = jax.jit(block_forward)(x, params)
    jax.block_until_ready(y)

    assert y.shape == (B, C_out, H // 2, H // 2), y.shape
    assert bool(jnp.all(jnp.isfinite(y)))

    y_ref = _reference_forward(x, params)
    max_err = float(jnp.max(jnp.abs(y - y_ref)))
    assert max_err < 5e-3, f"mismatch vs reference: max abs err {max_err}"

    print("KERNEL_OK")
</pallas_src>

<mosaic_0001>
module attributes {stable_mosaic.version = 11 : i64} {
  func.func @_fused_block_kernel(%arg0: memref<4x512xf32, #tpu.memory_space<vmem>>, %arg1: memref<9x5x128xf32, #tpu.memory_space<vmem>>, %arg2: memref<16x4xf32, #tpu.memory_space<vmem>>, %arg3: memref<16x16xf32, #tpu.memory_space<vmem>>, %arg4: memref<4x16xf32, #tpu.memory_space<vmem>>, %arg5: memref<4x1xf32, #tpu.memory_space<vmem>>, %arg6: memref<16x4xf32, #tpu.memory_space<vmem>>, %arg7: memref<8x16xf32, #tpu.memory_space<vmem>>, %arg8: memref<8x3xf32, #tpu.memory_space<vmem>>, %arg9: memref<8x128xf32, #tpu.memory_space<vmem>>) attributes {dimension_semantics = [], scalar_prefetch = 0 : i64, scratch_operands = 0 : i64, tpu.core_type = #tpu.core_type<tc>} {
    %c0 = arith.constant 0 : index
    %c0_0 = arith.constant 0 : index
    %0 = vector.load %arg2[%c0, %c0_0] : memref<16x4xf32, #tpu.memory_space<vmem>>, vector<16x4xf32>
    %c0_1 = arith.constant 0 : index
    %c0_2 = arith.constant 0 : index
    %1 = vector.load %arg3[%c0_1, %c0_2] : memref<16x16xf32, #tpu.memory_space<vmem>>, vector<16x1xf32>
    %c0_3 = arith.constant 0 : index
    %c1 = arith.constant 1 : index
    %2 = vector.load %arg3[%c0_3, %c1] : memref<16x16xf32, #tpu.memory_space<vmem>>, vector<16x1xf32>
    %c0_4 = arith.constant 0 : index
    %c2 = arith.constant 2 : index
    %3 = vector.load %arg3[%c0_4, %c2] : memref<16x16xf32, #tpu.memory_space<vmem>>, vector<16x1xf32>
    %c0_5 = arith.constant 0 : index
    %c3 = arith.constant 3 : index
    %4 = vector.load %arg3[%c0_5, %c3] : memref<16x16xf32, #tpu.memory_space<vmem>>, vector<16x1xf32>
    %c0_6 = arith.constant 0 : index
    %c4 = arith.constant 4 : index
    %5 = vector.load %arg3[%c0_6, %c4] : memref<16x16xf32, #tpu.memory_space<vmem>>, vector<16x1xf32>
    %c0_7 = arith.constant 0 : index
    %c5 = arith.constant 5 : index
    %6 = vector.load %arg3[%c0_7, %c5] : memref<16x16xf32, #tpu.memory_space<vmem>>, vector<16x1xf32>
    %c0_8 = arith.constant 0 : index
    %c6 = arith.constant 6 : index
    %7 = vector.load %arg3[%c0_8, %c6] : memref<16x16xf32, #tpu.memory_space<vmem>>, vector<16x1xf32>
    %c0_9 = arith.constant 0 : index
    %c0_10 = arith.constant 0 : index
    %8 = vector.load %arg0[%c0_9, %c0_10] : memref<4x512xf32, #tpu.memory_space<vmem>>, vector<4x512xf32>
    %9 = vector.extract_strided_slice %0 {offsets = [0, 0], sizes = [16, 1], strides = [1, 1]} : vector<16x4xf32> to vector<16x1xf32>
    %10 = vector.extract_strided_slice %8 {offsets = [0, 0], sizes = [1, 512], strides = [1, 1]} : vector<4x512xf32> to vector<1x512xf32>
    %11 = vector.broadcast %9 : vector<16x1xf32> to vector<16x512xf32>
    %12 = vector.broadcast %10 : vector<1x512xf32> to vector<16x512xf32>
    %13 = arith.mulf %11, %12 : vector<16x512xf32>
    %14 = vector.extract_strided_slice %0 {offsets = [0, 1], sizes = [16, 1], strides = [1, 1]} : vector<16x4xf32> to vector<16x1xf32>
    %15 = vector.extract_strided_slice %8 {offsets = [1, 0], sizes = [1, 512], strides = [1, 1]} : vector<4x512xf32> to vector<1x512xf32>
    %16 = vector.broadcast %14 : vector<16x1xf32> to vector<16x512xf32>
    %17 = vector.broadcast %15 : vector<1x512xf32> to vector<16x512xf32>
    %18 = arith.mulf %16, %17 : vector<16x512xf32>
    %19 = arith.addf %13, %18 : vector<16x512xf32>
    %20 = vector.extract_strided_slice %0 {offsets = [0, 2], sizes = [16, 1], strides = [1, 1]} : vector<16x4xf32> to vector<16x1xf32>
    %21 = vector.extract_strided_slice %8 {offsets = [2, 0], sizes = [1, 512], strides = [1, 1]} : vector<4x512xf32> to vector<1x512xf32>
    %22 = vector.broadcast %20 : vector<16x1xf32> to vector<16x512xf32>
    %23 = vector.broadcast %21 : vector<1x512xf32> to vector<16x512xf32>
    %24 = arith.mulf %22, %23 : vector<16x512xf32>
    %25 = arith.addf %19, %24 : vector<16x512xf32>
    %26 = vector.extract_strided_slice %0 {offsets = [0, 3], sizes = [16, 1], strides = [1, 1]} : vector<16x4xf32> to vector<16x1xf32>
    %27 = vector.extract_strided_slice %8 {offsets = [3, 0], sizes = [1, 512], strides = [1, 1]} : vector<4x512xf32> to vector<1x512xf32>
    %28 = vector.broadcast %26 : vector<16x1xf32> to vector<16x512xf32>
    %29 = vector.broadcast %27 : vector<1x512xf32> to vector<16x512xf32>
    %30 = arith.mulf %28, %29 : vector<16x512xf32>
    %31 = arith.addf %25, %30 : vector<16x512xf32>
    %32 = vector.broadcast %1 : vector<16x1xf32> to vector<16x512xf32>
    %33 = arith.addf %31, %32 : vector<16x512xf32>
    %cst = arith.constant dense<0.000000e+00> : vector<16xf32>
    %34 = vector.multi_reduction <add>, %33, %cst [1] : vector<16x512xf32> to vector<16xf32>
    %35 = vector.shape_cast %34 : vector<16xf32> to vector<16x1xf32>
    %36 = arith.mulf %33, %33 : vector<16x512xf32>
    %cst_11 = arith.constant dense<0.000000e+00> : vector<16xf32>
    %37 = vector.multi_reduction <add>, %36, %cst_11 [1] : vector<16x512xf32> to vector<16xf32>
    %38 = vector.shape_cast %37 : vector<16xf32> to vector<16x1xf32>
    %cst_12 = arith.constant 0.001953125 : f32
    %39 = vector.broadcast %cst_12 : f32 to vector<16x1xf32>
    %40 = arith.mulf %35, %39 : vector<16x1xf32>
    %cst_13 = arith.constant 0.001953125 : f32
    %41 = vector.broadcast %cst_13 : f32 to vector<16x1xf32>
    %42 = arith.mulf %38, %41 : vector<16x1xf32>
    %43 = arith.mulf %40, %40 : vector<16x1xf32>
    %44 = arith.subf %42, %43 : vector<16x1xf32>
    %cst_14 = arith.constant 0.000000e+00 : f32
    %45 = vector.broadcast %cst_14 : f32 to vector<16x1xf32>
    %46 = arith.maximumf %44, %45 : vector<16x1xf32>
    %cst_15 = arith.constant 1.000000e-03 : f32
    %47 = vector.broadcast %cst_15 : f32 to vector<16x1xf32>
    %48 = arith.addf %46, %47 : vector<16x1xf32>
    %49 = math.rsqrt %48 : vector<16x1xf32>
    %50 = arith.mulf %49, %2 : vector<16x1xf32>
    %51 = arith.mulf %40, %50 : vector<16x1xf32>
    %52 = arith.subf %3, %51 : vector<16x1xf32>
    %53 = vector.broadcast %50 : vector<16x1xf32> to vector<16x4xf32>
    %54 = arith.mulf %0, %53 : vector<16x4xf32>
    %55 = arith.mulf %1, %50 : vector<16x1xf32>
    %56 = arith.addf %55, %52 : vector<16x1xf32>
    %c0_16 = arith.constant 0 : index
    %c0_17 = arith.constant 0 : index
    %c0_18 = arith.constant 0 : index
    %57 = vector.load %arg1[%c0_16, %c0_17, %c0_18] : memref<9x5x128xf32, #tpu.memory_space<vmem>>, vector<1x5x128xf32>
    %58 = vector.shape_cast %57 : vector<1x5x128xf32> to vector<5x128xf32>
    %59 = vector.extract_strided_slice %58 {offsets = [0, 0], sizes = [4, 128], strides = [1, 1]} : vector<5x128xf32> to vector<4x128xf32>
    %60 = vector.extract_strided_slice %54 {offsets = [0, 0], sizes = [16, 1], strides = [1, 1]} : vector<16x4xf32> to vector<16x1xf32>
    %61 = vector.extract_strided_slice %59 {offsets = [0, 0], sizes = [1, 128], strides = [1, 1]} : vector<4x128xf32> to vector<1x128xf32>
    %62 = vector.broadcast %60 : vector<16x1xf32> to vector<16x128xf32>
    %63 = vector.broadcast %61 : vector<1x128xf32> to vector<16x128xf32>
    %64 = arith.mulf %62, %63 : vector<16x128xf32>
    %65 = vector.extract_strided_slice %54 {offsets = [0, 1], sizes = [16, 1], strides = [1, 1]} : vector<16x4xf32> to vector<16x1xf32>
    %66 = vector.extract_strided_slice %59 {offsets = [1, 0], sizes = [1, 128], strides = [1, 1]} : vector<4x128xf32> to vector<1x128xf32>
    %67 = vector.broadcast %65 : vector<16x1xf32> to vector<16x128xf32>
    %68 = vector.broadcast %66 : vector<1x128xf32> to vector<16x128xf32>
    %69 = arith.mulf %67, %68 : vector<16x128xf32>
    %70 = arith.addf %64, %69 : vector<16x128xf32>
    %71 = vector.extract_strided_slice %54 {offsets = [0, 2], sizes = [16, 1], strides = [1, 1]} : vector<16x4xf32> to vector<16x1xf32>
    %72 = vector.extract_strided_slice %59 {offsets = [2, 0], sizes = [1, 128], strides = [1, 1]} : vector<4x128xf32> to vector<1x128xf32>
    %73 = vector.broadcast %71 : vector<16x1xf32> to vector<16x128xf32>
    %74 = vector.broadcast %72 : vector<1x128xf32> to vector<16x128xf32>
    %75 = arith.mulf %73, %74 : vector<16x128xf32>
    %76 = arith.addf %70, %75 : vector<16x128xf32>
    %77 = vector.extract_strided_slice %54 {offsets = [0, 3], sizes = [16, 1], strides = [1, 1]} : vector<16x4xf32> to vector<16x1xf32>
    %78 = vector.extract_strided_slice %59 {offsets = [3, 0], sizes = [1, 128], strides = [1, 1]} : vector<4x128xf32> to vector<1x128xf32>
    %79 = vector.broadcast %77 : vector<16x1xf32> to vector<16x128xf32>
    %80 = vector.broadcast %78 : vector<1x128xf32> to vector<16x128xf32>
    %81 = arith.mulf %79, %80 : vector<16x128xf32>
    %82 = arith.addf %76, %81 : vector<16x128xf32>
    %83 = vector.broadcast %56 : vector<16x1xf32> to vector<16x128xf32>
    %84 = arith.addf %82, %83 : vector<16x128xf32>
    %cst_19 = arith.constant 0.000000e+00 : f32
    %85 = vector.broadcast %cst_19 : f32 to vector<16x128xf32>
    %86 = arith.cmpf oge, %84, %85 : vector<16x128xf32>
    %cst_20 = arith.constant 3.000000e-01 : f32
    %87 = vector.broadcast %cst_20 : f32 to vector<16x128xf32>
    %88 = arith.mulf %87, %84 : vector<16x128xf32>
    %89 = arith.select %86, %84, %88 : vector<16x128xi1>, vector<16x128xf32>
    %90 = vector.extract_strided_slice %58 {offsets = [4, 0], sizes = [1, 128], strides = [1, 1]} : vector<5x128xf32> to vector<1x128xf32>
    %91 = vector.broadcast %90 : vector<1x128xf32> to vector<16x128xf32>
    %92 = arith.mulf %89, %91 : vector<16x128xf32>
    %c0_21 = arith.constant 0 : index
    %c7 = arith.constant 7 : index
    %93 = vector.load %arg3[%c0_21, %c7] : memref<16x16xf32, #tpu.memory_space<vmem>>, vector<16x1xf32>
    %94 = vector.broadcast %93 : vector<16x1xf32> to vector<16x128xf32>
    %95 = arith.mulf %94, %92 : vector<16x128xf32>
    %c1_22 = arith.constant 1 : index
    %c0_23 = arith.constant 0 : index
    %c0_24 = arith.constant 0 : index
    %96 = vector.load %arg1[%c1_22, %c0_23, %c0_24] : memref<9x5x128xf32, #tpu.memory_space<vmem>>, vector<1x5x128xf32>
    %97 = vector.shape_cast %96 : vector<1x5x128xf32> to vector<5x128xf32>
    %98 = vector.extract_strided_slice %97 {offsets = [0, 0], sizes = [4, 128], strides = [1, 1]} : vector<5x128xf32> to vector<4x128xf32>
    %99 = vector.extract_strided_slice %54 {offsets = [0, 0], sizes = [16, 1], strides = [1, 1]} : vector<16x4xf32> to vector<16x1xf32>
    %100 = vector.extract_strided_slice %98 {offsets = [0, 0], sizes = [1, 128], strides = [1, 1]} : vector<4x128xf32> to vector<1x128xf32>
    %101 = vector.broadcast %99 : vector<16x1xf32> to vector<16x128xf32>
    %102 = vector.broadcast %100 : vector<1x128xf32> to vector<16x128xf32>
    %103 = arith.mulf %101, %102 : vector<16x128xf32>
    %104 = vector.extract_strided_slice %54 {offsets = [0, 1], sizes = [16, 1], strides = [1, 1]} : vector<16x4xf32> to vector<16x1xf32>
    %105 = vector.extract_strided_slice %98 {offsets = [1, 0], sizes = [1, 128], strides = [1, 1]} : vector<4x128xf32> to vector<1x128xf32>
    %106 = vector.broadcast %104 : vector<16x1xf32> to vector<16x128xf32>
    %107 = vector.broadcast %105 : vector<1x128xf32> to vector<16x128xf32>
    %108 = arith.mulf %106, %107 : vector<16x128xf32>
    %109 = arith.addf %103, %108 : vector<16x128xf32>
    %110 = vector.extract_strided_slice %54 {offsets = [0, 2], sizes = [16, 1], strides = [1, 1]} : vector<16x4xf32> to vector<16x1xf32>
    %111 = vector.extract_strided_slice %98 {offsets = [2, 0], sizes = [1, 128], strides = [1, 1]} : vector<4x128xf32> to vector<1x128xf32>
    %112 = vector.broadcast %110 : vector<16x1xf32> to vector<16x128xf32>
    %113 = vector.broadcast %111 : vector<1x128xf32> to vector<16x128xf32>
    %114 = arith.mulf %112, %113 : vector<16x128xf32>
    %115 = arith.addf %109, %114 : vector<16x128xf32>
    %116 = vector.extract_strided_slice %54 {offsets = [0, 3], sizes = [16, 1], strides = [1, 1]} : vector<16x4xf32> to vector<16x1xf32>
    %117 = vector.extract_strided_slice %98 {offsets = [3, 0], sizes = [1, 128], strides = [1, 1]} : vector<4x128xf32> to vector<1x128xf32>
    %118 = vector.broadcast %116 : vector<16x1xf32> to vector<16x128xf32>
    %119 = vector.broadcast %117 : vector<1x128xf32> to vector<16x128xf32>
    %120 = arith.mulf %118, %119 : vector<16x128xf32>
    %121 = arith.addf %115, %120 : vector<16x128xf32>
    %122 = vector.broadcast %56 : vector<16x1xf32> to vector<16x128xf32>
    %123 = arith.addf %121, %122 : vector<16x128xf32>
    %cst_25 = arith.constant 0.000000e+00 : f32
    %124 = vector.broadcast %cst_25 : f32 to vector<16x128xf32>
    %125 = arith.cmpf oge, %123, %124 : vector<16x128xf32>
    %cst_26 = arith.constant 3.000000e-01 : f32
    %126 = vector.broadcast %cst_26 : f32 to vector<16x128xf32>
    %127 = arith.mulf %126, %123 : vector<16x128xf32>
    %128 = arith.select %125, %123, %127 : vector<16x128xi1>, vector<16x128xf32>
    %129 = vector.extract_strided_slice %97 {offsets = [4, 0], sizes = [1, 128], strides = [1, 1]} : vector<5x128xf32> to vector<1x128xf32>
    %130 = vector.broadcast %129 : vector<1x128xf32> to vector<16x128xf32>
    %131 = arith.mulf %128, %130 : vector<16x128xf32>
    %c0_27 = arith.constant 0 : index
    %c8 = arith.constant 8 : index
    %132 = vector.load %arg3[%c0_27, %c8] : memref<16x16xf32, #tpu.memory_space<vmem>>, vector<16x1xf32>
    %133 = vector.broadcast %132 : vector<16x1xf32> to vector<16x128xf32>
    %134 = arith.mulf %133, %131 : vector<16x128xf32>
    %135 = arith.addf %95, %134 : vector<16x128xf32>
    %c2_28 = arith.constant 2 : index
    %c0_29 = arith.constant 0 : index
    %c0_30 = arith.constant 0 : index
    %136 = vector.load %arg1[%c2_28, %c0_29, %c0_30] : memref<9x5x128xf32, #tpu.memory_space<vmem>>, vector<1x5x128xf32>
    %137 = vector.shape_cast %136 : vector<1x5x128xf32> to vector<5x128xf32>
    %138 = vector.extract_strided_slice %137 {offsets = [0, 0], sizes = [4, 128], strides = [1, 1]} : vector<5x128xf32> to vector<4x128xf32>
    %139 = vector.extract_strided_slice %54 {offsets = [0, 0], sizes = [16, 1], strides = [1, 1]} : vector<16x4xf32> to vector<16x1xf32>
    %140 = vector.extract_strided_slice %138 {offsets = [0, 0], sizes = [1, 128], strides = [1, 1]} : vector<4x128xf32> to vector<1x128xf32>
    %141 = vector.broadcast %139 : vector<16x1xf32> to vector<16x128xf32>
    %142 = vector.broadcast %140 : vector<1x128xf32> to vector<16x128xf32>
    %143 = arith.mulf %141, %142 : vector<16x128xf32>
    %144 = vector.extract_strided_slice %54 {offsets = [0, 1], sizes = [16, 1], strides = [1, 1]} : vector<16x4xf32> to vector<16x1xf32>
    %145 = vector.extract_strided_slice %138 {offsets = [1, 0], sizes = [1, 128], strides = [1, 1]} : vector<4x128xf32> to vector<1x128xf32>
    %146 = vector.broadcast %144 : vector<16x1xf32> to vector<16x128xf32>
    %147 = vector.broadcast %145 : vector<1x128xf32> to vector<16x128xf32>
    %148 = arith.mulf %146, %147 : vector<16x128xf32>
    %149 = arith.addf %143, %148 : vector<16x128xf32>
    %150 = vector.extract_strided_slice %54 {offsets = [0, 2], sizes = [16, 1], strides = [1, 1]} : vector<16x4xf32> to vector<16x1xf32>
    %151 = vector.extract_strided_slice %138 {offsets = [2, 0], sizes = [1, 128], strides = [1, 1]} : vector<4x128xf32> to vector<1x128xf32>
    %152 = vector.broadcast %150 : vector<16x1xf32> to vector<16x128xf32>
    %153 = vector.broadcast %151 : vector<1x128xf32> to vector<16x128xf32>
    %154 = arith.mulf %152, %153 : vector<16x128xf32>
    %155 = arith.addf %149, %154 : vector<16x128xf32>
    %156 = vector.extract_strided_slice %54 {offsets = [0, 3], sizes = [16, 1], strides = [1, 1]} : vector<16x4xf32> to vector<16x1xf32>
    %157 = vector.extract_strided_slice %138 {offsets = [3, 0], sizes = [1, 128], strides = [1, 1]} : vector<4x128xf32> to vector<1x128xf32>
    %158 = vector.broadcast %156 : vector<16x1xf32> to vector<16x128xf32>
    %159 = vector.broadcast %157 : vector<1x128xf32> to vector<16x128xf32>
    %160 = arith.mulf %158, %159 : vector<16x128xf32>
    %161 = arith.addf %155, %160 : vector<16x128xf32>
    %162 = vector.broadcast %56 : vector<16x1xf32> to vector<16x128xf32>
    %163 = arith.addf %161, %162 : vector<16x128xf32>
    %cst_31 = arith.constant 0.000000e+00 : f32
    %164 = vector.broadcast %cst_31 : f32 to vector<16x128xf32>
    %165 = arith.cmpf oge, %163, %164 : vector<16x128xf32>
    %cst_32 = arith.constant 3.000000e-01 : f32
    %166 = vector.broadcast %cst_32 : f32 to vector<16x128xf32>
    %167 = arith.mulf %166, %163 : vector<16x128xf32>
    %168 = arith.select %165, %163, %167 : vector<16x128xi1>, vector<16x128xf32>
    %169 = vector.extract_strided_slice %137 {offsets = [4, 0], sizes = [1, 128], strides = [1, 1]} : vector<5x128xf32> to vector<1x128xf32>
    %170 = vector.broadcast %169 : vector<1x128xf32> to vector<16x128xf32>
    %171 = arith.mulf %168, %170 : vector<16x128xf32>
    %c0_33 = arith.constant 0 : index
    %c9 = arith.constant 9 : index
    %172 = vector.load %arg3[%c0_33, %c9] : memref<16x16xf32, #tpu.memory_space<vmem>>, vector<16x1xf32>
    %173 = vector.broadcast %172 : vector<16x1xf32> to vector<16x128xf32>
    %174 = arith.mulf %173, %171 : vector<16x128xf32>
    %175 = arith.addf %135, %174 : vector<16x128xf32>
    %c3_34 = arith.constant 3 : index
    %c0_35 = arith.constant 0 : index
    %c0_36 = arith.constant 0 : index
    %176 = vector.load %arg1[%c3_34, %c0_35, %c0_36] : memref<9x5x128xf32, #tpu.memory_space<vmem>>, vector<1x5x128xf32>
    %177 = vector.shape_cast %176 : vector<1x5x128xf32> to vector<5x128xf32>
    %178 = vector.extract_strided_slice %177 {offsets = [0, 0], sizes = [4, 128], strides = [1, 1]} : vector<5x128xf32> to vector<4x128xf32>
    %179 = vector.extract_strided_slice %54 {offsets = [0, 0], sizes = [16, 1], strides = [1, 1]} : vector<16x4xf32> to vector<16x1xf32>
    %180 = vector.extract_strided_slice %178 {offsets = [0, 0], sizes = [1, 128], strides = [1, 1]} : vector<4x128xf32> to vector<1x128xf32>
    %181 = vector.broadcast %179 : vector<16x1xf32> to vector<16x128xf32>
    %182 = vector.broadcast %180 : vector<1x128xf32> to vector<16x128xf32>
    %183 = arith.mulf %181, %182 : vector<16x128xf32>
    %184 = vector.extract_strided_slice %54 {offsets = [0, 1], sizes = [16, 1], strides = [1, 1]} : vector<16x4xf32> to vector<16x1xf32>
    %185 = vector.extract_strided_slice %178 {offsets = [1, 0], sizes = [1, 128], strides = [1, 1]} : vector<4x128xf32> to vector<1x128xf32>
    %186 = vector.broadcast %184 : vector<16x1xf32> to vector<16x128xf32>
    %187 = vector.broadcast %185 : vector<1x128xf32> to vector<16x128xf32>
    %188 = arith.mulf %186, %187 : vector<16x128xf32>
    %189 = arith.addf %183, %188 : vector<16x128xf32>
    %190 = vector.extract_strided_slice %54 {offsets = [0, 2], sizes = [16, 1], strides = [1, 1]} : vector<16x4xf32> to vector<16x1xf32>
    %191 = vector.extract_strided_slice %178 {offsets = [2, 0], sizes = [1, 128], strides = [1, 1]} : vector<4x128xf32> to vector<1x128xf32>
    %192 = vector.broadcast %190 : vector<16x1xf32> to vector<16x128xf32>
    %193 = vector.broadcast %191 : vector<1x128xf32> to vector<16x128xf32>
    %194 = arith.mulf %192, %193 : vector<16x128xf32>
    %195 = arith.addf %189, %194 : vector<16x128xf32>
    %196 = vector.extract_strided_slice %54 {offsets = [0, 3], sizes = [16, 1], strides = [1, 1]} : vector<16x4xf32> to vector<16x1xf32>
    %197 = vector.extract_strided_slice %178 {offsets = [3, 0], sizes = [1, 128], strides = [1, 1]} : vector<4x128xf32> to vector<1x128xf32>
    %198 = vector.broadcast %196 : vector<16x1xf32> to vector<16x128xf32>
    %199 = vector.broadcast %197 : vector<1x128xf32> to vector<16x128xf32>
    %200 = arith.mulf %198, %199 : vector<16x128xf32>
    %201 = arith.addf %195, %200 : vector<16x128xf32>
    %202 = vector.broadcast %56 : vector<16x1xf32> to vector<16x128xf32>
    %203 = arith.addf %201, %202 : vector<16x128xf32>
    %cst_37 = arith.constant 0.000000e+00 : f32
    %204 = vector.broadcast %cst_37 : f32 to vector<16x128xf32>
    %205 = arith.cmpf oge, %203, %204 : vector<16x128xf32>
    %cst_38 = arith.constant 3.000000e-01 : f32
    %206 = vector.broadcast %cst_38 : f32 to vector<16x128xf32>
    %207 = arith.mulf %206, %203 : vector<16x128xf32>
    %208 = arith.select %205, %203, %207 : vector<16x128xi1>, vector<16x128xf32>
    %209 = vector.extract_strided_slice %177 {offsets = [4, 0], sizes = [1, 128], strides = [1, 1]} : vector<5x128xf32> to vector<1x128xf32>
    %210 = vector.broadcast %209 : vector<1x128xf32> to vector<16x128xf32>
    %211 = arith.mulf %208, %210 : vector<16x128xf32>
    %c0_39 = arith.constant 0 : index
    %c10 = arith.constant 10 : index
    %212 = vector.load %arg3[%c0_39, %c10] : memref<16x16xf32, #tpu.memory_space<vmem>>, vector<16x1xf32>
    %213 = vector.broadcast %212 : vector<16x1xf32> to vector<16x128xf32>
    %214 = arith.mulf %213, %211 : vector<16x128xf32>
    %215 = arith.addf %175, %214 : vector<16x128xf32>
    %c4_40 = arith.constant 4 : index
    %c0_41 = arith.constant 0 : index
    %c0_42 = arith.constant 0 : index
    %216 = vector.load %arg1[%c4_40, %c0_41, %c0_42] : memref<9x5x128xf32, #tpu.memory_space<vmem>>, vector<1x5x128xf32>
    %217 = vector.shape_cast %216 : vector<1x5x128xf32> to vector<5x128xf32>
    %218 = vector.extract_strided_slice %217 {offsets = [0, 0], sizes = [4, 128], strides = [1, 1]} : vector<5x128xf32> to vector<4x128xf32>
    %219 = vector.extract_strided_slice %54 {offsets = [0, 0], sizes = [16, 1], strides = [1, 1]} : vector<16x4xf32> to vector<16x1xf32>
    %220 = vector.extract_strided_slice %218 {offsets = [0, 0], sizes = [1, 128], strides = [1, 1]} : vector<4x128xf32> to vector<1x128xf32>
    %221 = vector.broadcast %219 : vector<16x1xf32> to vector<16x128xf32>
    %222 = vector.broadcast %220 : vector<1x128xf32> to vector<16x128xf32>
    %223 = arith.mulf %221, %222 : vector<16x128xf32>
    %224 = vector.extract_strided_slice %54 {offsets = [0, 1], sizes = [16, 1], strides = [1, 1]} : vector<16x4xf32> to vector<16x1xf32>
    %225 = vector.extract_strided_slice %218 {offsets = [1, 0], sizes = [1, 128], strides = [1, 1]} : vector<4x128xf32> to vector<1x128xf32>
    %226 = vector.broadcast %224 : vector<16x1xf32> to vector<16x128xf32>
    %227 = vector.broadcast %225 : vector<1x128xf32> to vector<16x128xf32>
    %228 = arith.mulf %226, %227 : vector<16x128xf32>
    %229 = arith.addf %223, %228 : vector<16x128xf32>
    %230 = vector.extract_strided_slice %54 {offsets = [0, 2], sizes = [16, 1], strides = [1, 1]} : vector<16x4xf32> to vector<16x1xf32>
    %231 = vector.extract_strided_slice %218 {offsets = [2, 0], sizes = [1, 128], strides = [1, 1]} : vector<4x128xf32> to vector<1x128xf32>
    %232 = vector.broadcast %230 : vector<16x1xf32> to vector<16x128xf32>
    %233 = vector.broadcast %231 : vector<1x128xf32> to vector<16x128xf32>
    %234 = arith.mulf %232, %233 : vector<16x128xf32>
    %235 = arith.addf %229, %234 : vector<16x128xf32>
    %236 = vector.extract_strided_slice %54 {offsets = [0, 3], sizes = [16, 1], strides = [1, 1]} : vector<16x4xf32> to vector<16x1xf32>
    %237 = vector.extract_strided_slice %218 {offsets = [3, 0], sizes = [1, 128], strides = [1, 1]} : vector<4x128xf32> to vector<1x128xf32>
    %238 = vector.broadcast %236 : vector<16x1xf32> to vector<16x128xf32>
    %239 = vector.broadcast %237 : vector<1x128xf32> to vector<16x128xf32>
    %240 = arith.mulf %238, %239 : vector<16x128xf32>
    %241 = arith.addf %235, %240 : vector<16x128xf32>
    %242 = vector.broadcast %56 : vector<16x1xf32> to vector<16x128xf32>
    %243 = arith.addf %241, %242 : vector<16x128xf32>
    %cst_43 = arith.constant 0.000000e+00 : f32
    %244 = vector.broadcast %cst_43 : f32 to vector<16x128xf32>
    %245 = arith.cmpf oge, %243, %244 : vector<16x128xf32>
    %cst_44 = arith.constant 3.000000e-01 : f32
    %246 = vector.broadcast %cst_44 : f32 to vector<16x128xf32>
    %247 = arith.mulf %246, %243 : vector<16x128xf32>
    %248 = arith.select %245, %243, %247 : vector<16x128xi1>, vector<16x128xf32>
    %249 = vector.extract_strided_slice %217 {offsets = [4, 0], sizes = [1, 128], strides = [1, 1]} : vector<5x128xf32> to vector<1x128xf32>
    %250 = vector.broadcast %249 : vector<1x128xf32> to vector<16x128xf32>
    %251 = arith.mulf %248, %250 : vector<16x128xf32>
    %c0_45 = arith.constant 0 : index
    %c11 = arith.constant 11 : index
    %252 = vector.load %arg3[%c0_45, %c11] : memref<16x16xf32, #tpu.memory_space<vmem>>, vector<16x1xf32>
    %253 = vector.broadcast %252 : vector<16x1xf32> to vector<16x128xf32>
    %254 = arith.mulf %253, %251 : vector<16x128xf32>
    %255 = arith.addf %215, %254 : vector<16x128xf32>
    %c5_46 = arith.constant 5 : index
    %c0_47 = arith.constant 0 : index
    %c0_48 = arith.constant 0 : index
    %256 = vector.load %arg1[%c5_46, %c0_47, %c0_48] : memref<9x5x128xf32, #tpu.memory_space<vmem>>, vector<1x5x128xf32>
    %257 = vector.shape_cast %256 : vector<1x5x128xf32> to vector<5x128xf32>
    %258 = vector.extract_strided_slice %257 {offsets = [0, 0], sizes = [4, 128], strides = [1, 1]} : vector<5x128xf32> to vector<4x128xf32>
    %259 = vector.extract_strided_slice %54 {offsets = [0, 0], sizes = [16, 1], strides = [1, 1]} : vector<16x4xf32> to vector<16x1xf32>
    %260 = vector.extract_strided_slice %258 {offsets = [0, 0], sizes = [1, 128], strides = [1, 1]} : vector<4x128xf32> to vector<1x128xf32>
    %261 = vector.broadcast %259 : vector<16x1xf32> to vector<16x128xf32>
    %262 = vector.broadcast %260 : vector<1x128xf32> to vector<16x128xf32>
    %263 = arith.mulf %261, %262 : vector<16x128xf32>
    %264 = vector.extract_strided_slice %54 {offsets = [0, 1], sizes = [16, 1], strides = [1, 1]} : vector<16x4xf32> to vector<16x1xf32>
    %265 = vector.extract_strided_slice %258 {offsets = [1, 0], sizes = [1, 128], strides = [1, 1]} : vector<4x128xf32> to vector<1x128xf32>
    %266 = vector.broadcast %264 : vector<16x1xf32> to vector<16x128xf32>
    %267 = vector.broadcast %265 : vector<1x128xf32> to vector<16x128xf32>
    %268 = arith.mulf %266, %267 : vector<16x128xf32>
    %269 = arith.addf %263, %268 : vector<16x128xf32>
    %270 = vector.extract_strided_slice %54 {offsets = [0, 2], sizes = [16, 1], strides = [1, 1]} : vector<16x4xf32> to vector<16x1xf32>
    %271 = vector.extract_strided_slice %258 {offsets = [2, 0], sizes = [1, 128], strides = [1, 1]} : vector<4x128xf32> to vector<1x128xf32>
    %272 = vector.broadcast %270 : vector<16x1xf32> to vector<16x128xf32>
    %273 = vector.broadcast %271 : vector<1x128xf32> to vector<16x128xf32>
    %274 = arith.mulf %272, %273 : vector<16x128xf32>
    %275 = arith.addf %269, %274 : vector<16x128xf32>
    %276 = vector.extract_strided_slice %54 {offsets = [0, 3], sizes = [16, 1], strides = [1, 1]} : vector<16x4xf32> to vector<16x1xf32>
    %277 = vector.extract_strided_slice %258 {offsets = [3, 0], sizes = [1, 128], strides = [1, 1]} : vector<4x128xf32> to vector<1x128xf32>
    %278 = vector.broadcast %276 : vector<16x1xf32> to vector<16x128xf32>
    %279 = vector.broadcast %277 : vector<1x128xf32> to vector<16x128xf32>
    %280 = arith.mulf %278, %279 : vector<16x128xf32>
    %281 = arith.addf %275, %280 : vector<16x128xf32>
    %282 = vector.broadcast %56 : vector<16x1xf32> to vector<16x128xf32>
    %283 = arith.addf %281, %282 : vector<16x128xf32>
    %cst_49 = arith.constant 0.000000e+00 : f32
    %284 = vector.broadcast %cst_49 : f32 to vector<16x128xf32>
    %285 = arith.cmpf oge, %283, %284 : vector<16x128xf32>
    %cst_50 = arith.constant 3.000000e-01 : f32
    %286 = vector.broadcast %cst_50 : f32 to vector<16x128xf32>
    %287 = arith.mulf %286, %283 : vector<16x128xf32>
    %288 = arith.select %285, %283, %287 : vector<16x128xi1>, vector<16x128xf32>
    %289 = vector.extract_strided_slice %257 {offsets = [4, 0], sizes = [1, 128], strides = [1, 1]} : vector<5x128xf32> to vector<1x128xf32>
    %290 = vector.broadcast %289 : vector<1x128xf32> to vector<16x128xf32>
    %291 = arith.mulf %288, %290 : vector<16x128xf32>
    %c0_51 = arith.constant 0 : index
    %c12 = arith.constant 12 : index
    %292 = vector.load %arg3[%c0_51, %c12] : memref<16x16xf32, #tpu.memory_space<vmem>>, vector<16x1xf32>
    %293 = vector.broadcast %292 : vector<16x1xf32> to vector<16x128xf32>
    %294 = arith.mulf %293, %291 : vector<16x128xf32>
    %295 = arith.addf %255, %294 : vector<16x128xf32>
    %c6_52 = arith.constant 6 : index
    %c0_53 = arith.constant 0 : index
    %c0_54 = arith.constant 0 : index
    %296 = vector.load %arg1[%c6_52, %c0_53, %c0_54] : memref<9x5x128xf32, #tpu.memory_space<vmem>>, vector<1x5x128xf32>
    %297 = vector.shape_cast %296 : vector<1x5x128xf32> to vector<5x128xf32>
    %298 = vector.extract_strided_slice %297 {offsets = [0, 0], sizes = [4, 128], strides = [1, 1]} : vector<5x128xf32> to vector<4x128xf32>
    %299 = vector.extract_strided_slice %54 {offsets = [0, 0], sizes = [16, 1], strides = [1, 1]} : vector<16x4xf32> to vector<16x1xf32>
    %300 = vector.extract_strided_slice %298 {offsets = [0, 0], sizes = [1, 128], strides = [1, 1]} : vector<4x128xf32> to vector<1x128xf32>
    %301 = vector.broadcast %299 : vector<16x1xf32> to vector<16x128xf32>
    %302 = vector.broadcast %300 : vector<1x128xf32> to vector<16x128xf32>
    %303 = arith.mulf %301, %302 : vector<16x128xf32>
    %304 = vector.extract_strided_slice %54 {offsets = [0, 1], sizes = [16, 1], strides = [1, 1]} : vector<16x4xf32> to vector<16x1xf32>
    %305 = vector.extract_strided_slice %298 {offsets = [1, 0], sizes = [1, 128], strides = [1, 1]} : vector<4x128xf32> to vector<1x128xf32>
    %306 = vector.broadcast %304 : vector<16x1xf32> to vector<16x128xf32>
    %307 = vector.broadcast %305 : vector<1x128xf32> to vector<16x128xf32>
    %308 = arith.mulf %306, %307 : vector<16x128xf32>
    %309 = arith.addf %303, %308 : vector<16x128xf32>
    %310 = vector.extract_strided_slice %54 {offsets = [0, 2], sizes = [16, 1], strides = [1, 1]} : vector<16x4xf32> to vector<16x1xf32>
    %311 = vector.extract_strided_slice %298 {offsets = [2, 0], sizes = [1, 128], strides = [1, 1]} : vector<4x128xf32> to vector<1x128xf32>
    %312 = vector.broadcast %310 : vector<16x1xf32> to vector<16x128xf32>
    %313 = vector.broadcast %311 : vector<1x128xf32> to vector<16x128xf32>
    %314 = arith.mulf %312, %313 : vector<16x128xf32>
    %315 = arith.addf %309, %314 : vector<16x128xf32>
    %316 = vector.extract_strided_slice %54 {offsets = [0, 3], sizes = [16, 1], strides = [1, 1]} : vector<16x4xf32> to vector<16x1xf32>
    %317 = vector.extract_strided_slice %298 {offsets = [3, 0], sizes = [1, 128], strides = [1, 1]} : vector<4x128xf32> to vector<1x128xf32>
    %318 = vector.broadcast %316 : vector<16x1xf32> to vector<16x128xf32>
    %319 = vector.broadcast %317 : vector<1x128xf32> to vector<16x128xf32>
    %320 = arith.mulf %318, %319 : vector<16x128xf32>
    %321 = arith.addf %315, %320 : vector<16x128xf32>
    %322 = vector.broadcast %56 : vector<16x1xf32> to vector<16x128xf32>
    %323 = arith.addf %321, %322 : vector<16x128xf32>
    %cst_55 = arith.constant 0.000000e+00 : f32
    %324 = vector.broadcast %cst_55 : f32 to vector<16x128xf32>
    %325 = arith.cmpf oge, %323, %324 : vector<16x128xf32>
    %cst_56 = arith.constant 3.000000e-01 : f32
    %326 = vector.broadcast %cst_56 : f32 to vector<16x128xf32>
    %327 = arith.mulf %326, %323 : vector<16x128xf32>
    %328 = arith.select %325, %323, %327 : vector<16x128xi1>, vector<16x128xf32>
    %329 = vector.extract_strided_slice %297 {offsets = [4, 0], sizes = [1, 128], strides = [1, 1]} : vector<5x128xf32> to vector<1x128xf32>
    %330 = vector.broadcast %329 : vector<1x128xf32> to vector<16x128xf32>
    %331 = arith.mulf %328, %330 : vector<16x128xf32>
    %c0_57 = arith.constant 0 : index
    %c13 = arith.constant 13 : index
    %332 = vector.load %arg3[%c0_57, %c13] : memref<16x16xf32, #tpu.memory_space<vmem>>, vector<16x1xf32>
    %333 = vector.broadcast %332 : vector<16x1xf32> to vector<16x128xf32>
    %334 = arith.mulf %333, %331 : vector<16x128xf32>
    %335 = arith.addf %295, %334 : vector<16x128xf32>
    %c7_58 = arith.constant 7 : index
    %c0_59 = arith.constant 0 : index
    %c0_60 = arith.constant 0 : index
    %336 = vector.load %arg1[%c7_58, %c0_59, %c0_60] : memref<9x5x128xf32, #tpu.memory_space<vmem>>, vector<1x5x128xf32>
    %337 = vector.shape_cast %336 : vector<1x5x128xf32> to vector<5x128xf32>
    %338 = vector.extract_strided_slice %337 {offsets = [0, 0], sizes = [4, 128], strides = [1, 1]} : vector<5x128xf32> to vector<4x128xf32>
    %339 = vector.extract_strided_slice %54 {offsets = [0, 0], sizes = [16, 1], strides = [1, 1]} : vector<16x4xf32> to vector<16x1xf32>
    %340 = vector.extract_strided_slice %338 {offsets = [0, 0], sizes = [1, 128], strides = [1, 1]} : vector<4x128xf32> to vector<1x128xf32>
    %341 = vector.broadcast %339 : vector<16x1xf32> to vector<16x128xf32>
    %342 = vector.broadcast %340 : vector<1x128xf32> to vector<16x128xf32>
    %343 = arith.mulf %341, %342 : vector<16x128xf32>
    %344 = vector.extract_strided_slice %54 {offsets = [0, 1], sizes = [16, 1], strides = [1, 1]} : vector<16x4xf32> to vector<16x1xf32>
    %345 = vector.extract_strided_slice %338 {offsets = [1, 0], sizes = [1, 128], strides = [1, 1]} : vector<4x128xf32> to vector<1x128xf32>
    %346 = vector.broadcast %344 : vector<16x1xf32> to vector<16x128xf32>
    %347 = vector.broadcast %345 : vector<1x128xf32> to vector<16x128xf32>
    %348 = arith.mulf %346, %347 : vector<16x128xf32>
    %349 = arith.addf %343, %348 : vector<16x128xf32>
    %350 = vector.extract_strided_slice %54 {offsets = [0, 2], sizes = [16, 1], strides = [1, 1]} : vector<16x4xf32> to vector<16x1xf32>
    %351 = vector.extract_strided_slice %338 {offsets = [2, 0], sizes = [1, 128], strides = [1, 1]} : vector<4x128xf32> to vector<1x128xf32>
    %352 = vector.broadcast %350 : vector<16x1xf32> to vector<16x128xf32>
    %353 = vector.broadcast %351 : vector<1x128xf32> to vector<16x128xf32>
    %354 = arith.mulf %352, %353 : vector<16x128xf32>
    %355 = arith.addf %349, %354 : vector<16x128xf32>
    %356 = vector.extract_strided_slice %54 {offsets = [0, 3], sizes = [16, 1], strides = [1, 1]} : vector<16x4xf32> to vector<16x1xf32>
    %357 = vector.extract_strided_slice %338 {offsets = [3, 0], sizes = [1, 128], strides = [1, 1]} : vector<4x128xf32> to vector<1x128xf32>
    %358 = vector.broadcast %356 : vector<16x1xf32> to vector<16x128xf32>
    %359 = vector.broadcast %357 : vector<1x128xf32> to vector<16x128xf32>
    %360 = arith.mulf %358, %359 : vector<16x128xf32>
    %361 = arith.addf %355, %360 : vector<16x128xf32>
    %362 = vector.broadcast %56 : vector<16x1xf32> to vector<16x128xf32>
    %363 = arith.addf %361, %362 : vector<16x128xf32>
    %cst_61 = arith.constant 0.000000e+00 : f32
    %364 = vector.broadcast %cst_61 : f32 to vector<16x128xf32>
    %365 = arith.cmpf oge, %363, %364 : vector<16x128xf32>
    %cst_62 = arith.constant 3.000000e-01 : f32
    %366 = vector.broadcast %cst_62 : f32 to vector<16x128xf32>
    %367 = arith.mulf %366, %363 : vector<16x128xf32>
    %368 = arith.select %365, %363, %367 : vector<16x128xi1>, vector<16x128xf32>
    %369 = vector.extract_strided_slice %337 {offsets = [4, 0], sizes = [1, 128], strides = [1, 1]} : vector<5x128xf32> to vector<1x128xf32>
    %370 = vector.broadcast %369 : vector<1x128xf32> to vector<16x128xf32>
    %371 = arith.mulf %368, %370 : vector<16x128xf32>
    %c0_63 = arith.constant 0 : index
    %c14 = arith.constant 14 : index
    %372 = vector.load %arg3[%c0_63, %c14] : memref<16x16xf32, #tpu.memory_space<vmem>>, vector<16x1xf32>
    %373 = vector.broadcast %372 : vector<16x1xf32> to vector<16x128xf32>
    %374 = arith.mulf %373, %371 : vector<16x128xf32>
    %375 = arith.addf %335, %374 : vector<16x128xf32>
    %c8_64 = arith.constant 8 : index
    %c0_65 = arith.constant 0 : index
    %c0_66 = arith.constant 0 : index
    %376 = vector.load %arg1[%c8_64, %c0_65, %c0_66] : memref<9x5x128xf32, #tpu.memory_space<vmem>>, vector<1x5x128xf32>
    %377 = vector.shape_cast %376 : vector<1x5x128xf32> to vector<5x128xf32>
    %378 = vector.extract_strided_slice %377 {offsets = [0, 0], sizes = [4, 128], strides = [1, 1]} : vector<5x128xf32> to vector<4x128xf32>
    %379 = vector.extract_strided_slice %54 {offsets = [0, 0], sizes = [16, 1], strides = [1, 1]} : vector<16x4xf32> to vector<16x1xf32>
    %380 = vector.extract_strided_slice %378 {offsets = [0, 0], sizes = [1, 128], strides = [1, 1]} : vector<4x128xf32> to vector<1x128xf32>
    %381 = vector.broadcast %379 : vector<16x1xf32> to vector<16x128xf32>
    %382 = vector.broadcast %380 : vector<1x128xf32> to vector<16x128xf32>
    %383 = arith.mulf %381, %382 : vector<16x128xf32>
    %384 = vector.extract_strided_slice %54 {offsets = [0, 1], sizes = [16, 1], strides = [1, 1]} : vector<16x4xf32> to vector<16x1xf32>
    %385 = vector.extract_strided_slice %378 {offsets = [1, 0], sizes = [1, 128], strides = [1, 1]} : vector<4x128xf32> to vector<1x128xf32>
    %386 = vector.broadcast %384 : vector<16x1xf32> to vector<16x128xf32>
    %387 = vector.broadcast %385 : vector<1x128xf32> to vector<16x128xf32>
    %388 = arith.mulf %386, %387 : vector<16x128xf32>
    %389 = arith.addf %383, %388 : vector<16x128xf32>
    %390 = vector.extract_strided_slice %54 {offsets = [0, 2], sizes = [16, 1], strides = [1, 1]} : vector<16x4xf32> to vector<16x1xf32>
    %391 = vector.extract_strided_slice %378 {offsets = [2, 0], sizes = [1, 128], strides = [1, 1]} : vector<4x128xf32> to vector<1x128xf32>
    %392 = vector.broadcast %390 : vector<16x1xf32> to vector<16x128xf32>
    %393 = vector.broadcast %391 : vector<1x128xf32> to vector<16x128xf32>
    %394 = arith.mulf %392, %393 : vector<16x128xf32>
    %395 = arith.addf %389, %394 : vector<16x128xf32>
    %396 = vector.extract_strided_slice %54 {offsets = [0, 3], sizes = [16, 1], strides = [1, 1]} : vector<16x4xf32> to vector<16x1xf32>
    %397 = vector.extract_strided_slice %378 {offsets = [3, 0], sizes = [1, 128], strides = [1, 1]} : vector<4x128xf32> to vector<1x128xf32>
    %398 = vector.broadcast %396 : vector<16x1xf32> to vector<16x128xf32>
    %399 = vector.broadcast %397 : vector<1x128xf32> to vector<16x128xf32>
    %400 = arith.mulf %398, %399 : vector<16x128xf32>
    %401 = arith.addf %395, %400 : vector<16x128xf32>
    %402 = vector.broadcast %56 : vector<16x1xf32> to vector<16x128xf32>
    %403 = arith.addf %401, %402 : vector<16x128xf32>
    %cst_67 = arith.constant 0.000000e+00 : f32
    %404 = vector.broadcast %cst_67 : f32 to vector<16x128xf32>
    %405 = arith.cmpf oge, %403, %404 : vector<16x128xf32>
    %cst_68 = arith.constant 3.000000e-01 : f32
    %406 = vector.broadcast %cst_68 : f32 to vector<16x128xf32>
    %407 = arith.mulf %406, %403 : vector<16x128xf32>
    %408 = arith.select %405, %403, %407 : vector<16x128xi1>, vector<16x128xf32>
    %409 = vector.extract_strided_slice %377 {offsets = [4, 0], sizes = [1, 128], strides = [1, 1]} : vector<5x128xf32> to vector<1x128xf32>
    %410 = vector.broadcast %409 : vector<1x128xf32> to vector<16x128xf32>
    %411 = arith.mulf %408, %410 : vector<16x128xf32>
    %c0_69 = arith.constant 0 : index
    %c15 = arith.constant 15 : index
    %412 = vector.load %arg3[%c0_69, %c15] : memref<16x16xf32, #tpu.memory_space<vmem>>, vector<16x1xf32>
    %413 = vector.broadcast %412 : vector<16x1xf32> to vector<16x128xf32>
    %414 = arith.mulf %413, %411 : vector<16x128xf32>
    %415 = arith.addf %375, %414 : vector<16x128xf32>
    %416 = vector.broadcast %4 : vector<16x1xf32> to vector<16x128xf32>
    %417 = arith.addf %415, %416 : vector<16x128xf32>
    %cst_70 = arith.constant dense<0.000000e+00> : vector<16xf32>
    %418 = vector.multi_reduction <add>, %417, %cst_70 [1] : vector<16x128xf32> to vector<16xf32>
    %419 = vector.shape_cast %418 : vector<16xf32> to vector<16x1xf32>
    %420 = arith.mulf %417, %417 : vector<16x128xf32>
    %cst_71 = arith.constant dense<0.000000e+00> : vector<16xf32>
    %421 = vector.multi_reduction <add>, %420, %cst_71 [1] : vector<16x128xf32> to vector<16xf32>
    %422 = vector.shape_cast %421 : vector<16xf32> to vector<16x1xf32>
    %cst_72 = arith.constant 7.812500e-03 : f32
    %423 = vector.broadcast %cst_72 : f32 to vector<16x1xf32>
    %424 = arith.mulf %419, %423 : vector<16x1xf32>
    %cst_73 = arith.constant 7.812500e-03 : f32
    %425 = vector.broadcast %cst_73 : f32 to vector<16x1xf32>
    %426 = arith.mulf %422, %425 : vector<16x1xf32>
    %427 = arith.mulf %424, %424 : vector<16x1xf32>
    %428 = arith.subf %426, %427 : vector<16x1xf32>
    %cst_74 = arith.constant 0.000000e+00 : f32
    %429 = vector.broadcast %cst_74 : f32 to vector<16x1xf32>
    %430 = arith.maximumf %428, %429 : vector<16x1xf32>
    %cst_75 = arith.constant 1.000000e-03 : f32
    %431 = vector.broadcast %cst_75 : f32 to vector<16x1xf32>
    %432 = arith.addf %430, %431 : vector<16x1xf32>
    %433 = math.rsqrt %432 : vector<16x1xf32>
    %434 = arith.mulf %433, %5 : vector<16x1xf32>
    %435 = arith.mulf %424, %434 : vector<16x1xf32>
    %436 = arith.subf %6, %435 : vector<16x1xf32>
    %437 = vector.broadcast %434 : vector<16x1xf32> to vector<16x128xf32>
    %438 = arith.mulf %417, %437 : vector<16x128xf32>
    %439 = vector.broadcast %436 : vector<16x1xf32> to vector<16x128xf32>
    %440 = arith.addf %438, %439 : vector<16x128xf32>
    %cst_76 = arith.constant 0.000000e+00 : f32
    %441 = vector.broadcast %cst_76 : f32 to vector<16x128xf32>
    %442 = arith.cmpf oge, %440, %441 : vector<16x128xf32>
    %cst_77 = arith.constant 3.000000e-01 : f32
    %443 = vector.broadcast %cst_77 : f32 to vector<16x128xf32>
    %444 = arith.mulf %443, %440 : vector<16x128xf32>
    %445 = arith.select %442, %440, %444 : vector<16x128xi1>, vector<16x128xf32>
    %c0_78 = arith.constant 0 : index
    %c0_79 = arith.constant 0 : index
    %446 = vector.load %arg4[%c0_78, %c0_79] : memref<4x16xf32, #tpu.memory_space<vmem>>, vector<4x16xf32>
    %c0_80 = arith.constant 0 : index
    %c0_81 = arith.constant 0 : index
    %447 = vector.load %arg5[%c0_80, %c0_81] : memref<4x1xf32, #tpu.memory_space<vmem>>, vector<4x1xf32>
    %c0_82 = arith.constant 0 : index
    %c0_83 = arith.constant 0 : index
    %448 = vector.load %arg6[%c0_82, %c0_83] : memref<16x4xf32, #tpu.memory_space<vmem>>, vector<16x4xf32>
    %449 = vector.extract_strided_slice %445 {offsets = [0, 0], sizes = [16, 64], strides = [1, 1]} : vector<16x128xf32> to vector<16x64xf32>
    %cst_84 = arith.constant dense<0.000000e+00> : vector<16xf32>
    %450 = vector.multi_reduction <add>, %449, %cst_84 [1] : vector<16x64xf32> to vector<16xf32>
    %451 = vector.shape_cast %450 : vector<16xf32> to vector<16x1xf32>
    %cst_85 = arith.constant 1.562500e-02 : f32
    %452 = vector.broadcast %cst_85 : f32 to vector<16x1xf32>
    %453 = arith.mulf %451, %452 : vector<16x1xf32>
    %454 = vector.extract_strided_slice %446 {offsets = [0, 0], sizes = [4, 1], strides = [1, 1]} : vector<4x16xf32> to vector<4x1xf32>
    %455 = vector.extract_strided_slice %453 {offsets = [0, 0], sizes = [1, 1], strides = [1, 1]} : vector<16x1xf32> to vector<1x1xf32>
    %456 = vector.broadcast %455 : vector<1x1xf32> to vector<4x1xf32>
    %457 = arith.mulf %454, %456 : vector<4x1xf32>
    %458 = vector.extract_strided_slice %446 {offsets = [0, 1], sizes = [4, 1], strides = [1, 1]} : vector<4x16xf32> to vector<4x1xf32>
    %459 = vector.extract_strided_slice %453 {offsets = [1, 0], sizes = [1, 1], strides = [1, 1]} : vector<16x1xf32> to vector<1x1xf32>
    %460 = vector.broadcast %459 : vector<1x1xf32> to vector<4x1xf32>
    %461 = arith.mulf %458, %460 : vector<4x1xf32>
    %462 = arith.addf %457, %461 : vector<4x1xf32>
    %463 = vector.extract_strided_slice %446 {offsets = [0, 2], sizes = [4, 1], strides = [1, 1]} : vector<4x16xf32> to vector<4x1xf32>
    %464 = vector.extract_strided_slice %453 {offsets = [2, 0], sizes = [1, 1], strides = [1, 1]} : vector<16x1xf32> to vector<1x1xf32>
    %465 = vector.broadcast %464 : vector<1x1xf32> to vector<4x1xf32>
    %466 = arith.mulf %463, %465 : vector<4x1xf32>
    %467 = arith.addf %462, %466 : vector<4x1xf32>
    %468 = vector.extract_strided_slice %446 {offsets = [0, 3], sizes = [4, 1], strides = [1, 1]} : vector<4x16xf32> to vector<4x1xf32>
    %469 = vector.extract_strided_slice %453 {offsets = [3, 0], sizes = [1, 1], strides = [1, 1]} : vector<16x1xf32> to vector<1x1xf32>
    %470 = vector.broadcast %469 : vector<1x1xf32> to vector<4x1xf32>
    %471 = arith.mulf %468, %470 : vector<4x1xf32>
    %472 = arith.addf %467, %471 : vector<4x1xf32>
    %473 = vector.extract_strided_slice %446 {offsets = [0, 4], sizes = [4, 1], strides = [1, 1]} : vector<4x16xf32> to vector<4x1xf32>
    %474 = vector.extract_strided_slice %453 {offsets = [4, 0], sizes = [1, 1], strides = [1, 1]} : vector<16x1xf32> to vector<1x1xf32>
    %475 = vector.broadcast %474 : vector<1x1xf32> to vector<4x1xf32>
    %476 = arith.mulf %473, %475 : vector<4x1xf32>
    %477 = arith.addf %472, %476 : vector<4x1xf32>
    %478 = vector.extract_strided_slice %446 {offsets = [0, 5], sizes = [4, 1], strides = [1, 1]} : vector<4x16xf32> to vector<4x1xf32>
    %479 = vector.extract_strided_slice %453 {offsets = [5, 0], sizes = [1, 1], strides = [1, 1]} : vector<16x1xf32> to vector<1x1xf32>
    %480 = vector.broadcast %479 : vector<1x1xf32> to vector<4x1xf32>
    %481 = arith.mulf %478, %480 : vector<4x1xf32>
    %482 = arith.addf %477, %481 : vector<4x1xf32>
    %483 = vector.extract_strided_slice %446 {offsets = [0, 6], sizes = [4, 1], strides = [1, 1]} : vector<4x16xf32> to vector<4x1xf32>
    %484 = vector.extract_strided_slice %453 {offsets = [6, 0], sizes = [1, 1], strides = [1, 1]} : vector<16x1xf32> to vector<1x1xf32>
    %485 = vector.broadcast %484 : vector<1x1xf32> to vector<4x1xf32>
    %486 = arith.mulf %483, %485 : vector<4x1xf32>
    %487 = arith.addf %482, %486 : vector<4x1xf32>
    %488 = vector.extract_strided_slice %446 {offsets = [0, 7], sizes = [4, 1], strides = [1, 1]} : vector<4x16xf32> to vector<4x1xf32>
    %489 = vector.extract_strided_slice %453 {offsets = [7, 0], sizes = [1, 1], strides = [1, 1]} : vector<16x1xf32> to vector<1x1xf32>
    %490 = vector.broadcast %489 : vector<1x1xf32> to vector<4x1xf32>
    %491 = arith.mulf %488, %490 : vector<4x1xf32>
    %492 = arith.addf %487, %491 : vector<4x1xf32>
    %493 = vector.extract_strided_slice %446 {offsets = [0, 8], sizes = [4, 1], strides = [1, 1]} : vector<4x16xf32> to vector<4x1xf32>
    %494 = vector.extract_strided_slice %453 {offsets = [8, 0], sizes = [1, 1], strides = [1, 1]} : vector<16x1xf32> to vector<1x1xf32>
    %495 = vector.broadcast %494 : vector<1x1xf32> to vector<4x1xf32>
    %496 = arith.mulf %493, %495 : vector<4x1xf32>
    %497 = arith.addf %492, %496 : vector<4x1xf32>
    %498 = vector.extract_strided_slice %446 {offsets = [0, 9], sizes = [4, 1], strides = [1, 1]} : vector<4x16xf32> to vector<4x1xf32>
    %499 = vector.extract_strided_slice %453 {offsets = [9, 0], sizes = [1, 1], strides = [1, 1]} : vector<16x1xf32> to vector<1x1xf32>
    %500 = vector.broadcast %499 : vector<1x1xf32> to vector<4x1xf32>
    %501 = arith.mulf %498, %500 : vector<4x1xf32>
    %502 = arith.addf %497, %501 : vector<4x1xf32>
    %503 = vector.extract_strided_slice %446 {offsets = [0, 10], sizes = [4, 1], strides = [1, 1]} : vector<4x16xf32> to vector<4x1xf32>
    %504 = vector.extract_strided_slice %453 {offsets = [10, 0], sizes = [1, 1], strides = [1, 1]} : vector<16x1xf32> to vector<1x1xf32>
    %505 = vector.broadcast %504 : vector<1x1xf32> to vector<4x1xf32>
    %506 = arith.mulf %503, %505 : vector<4x1xf32>
    %507 = arith.addf %502, %506 : vector<4x1xf32>
    %508 = vector.extract_strided_slice %446 {offsets = [0, 11], sizes = [4, 1], strides = [1, 1]} : vector<4x16xf32> to vector<4x1xf32>
    %509 = vector.extract_strided_slice %453 {offsets = [11, 0], sizes = [1, 1], strides = [1, 1]} : vector<16x1xf32> to vector<1x1xf32>
    %510 = vector.broadcast %509 : vector<1x1xf32> to vector<4x1xf32>
    %511 = arith.mulf %508, %510 : vector<4x1xf32>
    %512 = arith.addf %507, %511 : vector<4x1xf32>
    %513 = vector.extract_strided_slice %446 {offsets = [0, 12], sizes = [4, 1], strides = [1, 1]} : vector<4x16xf32> to vector<4x1xf32>
    %514 = vector.extract_strided_slice %453 {offsets = [12, 0], sizes = [1, 1], strides = [1, 1]} : vector<16x1xf32> to vector<1x1xf32>
    %515 = vector.broadcast %514 : vector<1x1xf32> to vector<4x1xf32>
    %516 = arith.mulf %513, %515 : vector<4x1xf32>
    %517 = arith.addf %512, %516 : vector<4x1xf32>
    %518 = vector.extract_strided_slice %446 {offsets = [0, 13], sizes = [4, 1], strides = [1, 1]} : vector<4x16xf32> to vector<4x1xf32>
    %519 = vector.extract_strided_slice %453 {offsets = [13, 0], sizes = [1, 1], strides = [1, 1]} : vector<16x1xf32> to vector<1x1xf32>
    %520 = vector.broadcast %519 : vector<1x1xf32> to vector<4x1xf32>
    %521 = arith.mulf %518, %520 : vector<4x1xf32>
    %522 = arith.addf %517, %521 : vector<4x1xf32>
    %523 = vector.extract_strided_slice %446 {offsets = [0, 14], sizes = [4, 1], strides = [1, 1]} : vector<4x16xf32> to vector<4x1xf32>
    %524 = vector.extract_strided_slice %453 {offsets = [14, 0], sizes = [1, 1], strides = [1, 1]} : vector<16x1xf32> to vector<1x1xf32>
    %525 = vector.broadcast %524 : vector<1x1xf32> to vector<4x1xf32>
    %526 = arith.mulf %523, %525 : vector<4x1xf32>
    %527 = arith.addf %522, %526 : vector<4x1xf32>
    %528 = vector.extract_strided_slice %446 {offsets = [0, 15], sizes = [4, 1], strides = [1, 1]} : vector<4x16xf32> to vector<4x1xf32>
    %529 = vector.extract_strided_slice %453 {offsets = [15, 0], sizes = [1, 1], strides = [1, 1]} : vector<16x1xf32> to vector<1x1xf32>
    %530 = vector.broadcast %529 : vector<1x1xf32> to vector<4x1xf32>
    %531 = arith.mulf %528, %530 : vector<4x1xf32>
    %532 = arith.addf %527, %531 : vector<4x1xf32>
    %533 = arith.addf %532, %447 : vector<4x1xf32>
    %cst_86 = arith.constant 0.000000e+00 : f32
    %534 = vector.broadcast %cst_86 : f32 to vector<4x1xf32>
    %535 = arith.cmpf oge, %533, %534 : vector<4x1xf32>
    %cst_87 = arith.constant 3.000000e-01 : f32
    %536 = vector.broadcast %cst_87 : f32 to vector<4x1xf32>
    %537 = arith.mulf %536, %533 : vector<4x1xf32>
    %538 = arith.select %535, %533, %537 : vector<4x1xi1>, vector<4x1xf32>
    %539 = vector.extract_strided_slice %448 {offsets = [0, 0], sizes = [16, 1], strides = [1, 1]} : vector<16x4xf32> to vector<16x1xf32>
    %540 = vector.extract_strided_slice %538 {offsets = [0, 0], sizes = [1, 1], strides = [1, 1]} : vector<4x1xf32> to vector<1x1xf32>
    %541 = vector.broadcast %540 : vector<1x1xf32> to vector<16x1xf32>
    %542 = arith.mulf %539, %541 : vector<16x1xf32>
    %543 = vector.extract_strided_slice %448 {offsets = [0, 1], sizes = [16, 1], strides = [1, 1]} : vector<16x4xf32> to vector<16x1xf32>
    %544 = vector.extract_strided_slice %538 {offsets = [1, 0], sizes = [1, 1], strides = [1, 1]} : vector<4x1xf32> to vector<1x1xf32>
    %545 = vector.broadcast %544 : vector<1x1xf32> to vector<16x1xf32>
    %546 = arith.mulf %543, %545 : vector<16x1xf32>
    %547 = arith.addf %542, %546 : vector<16x1xf32>
    %548 = vector.extract_strided_slice %448 {offsets = [0, 2], sizes = [16, 1], strides = [1, 1]} : vector<16x4xf32> to vector<16x1xf32>
    %549 = vector.extract_strided_slice %538 {offsets = [2, 0], sizes = [1, 1], strides = [1, 1]} : vector<4x1xf32> to vector<1x1xf32>
    %550 = vector.broadcast %549 : vector<1x1xf32> to vector<16x1xf32>
    %551 = arith.mulf %548, %550 : vector<16x1xf32>
    %552 = arith.addf %547, %551 : vector<16x1xf32>
    %553 = vector.extract_strided_slice %448 {offsets = [0, 3], sizes = [16, 1], strides = [1, 1]} : vector<16x4xf32> to vector<16x1xf32>
    %554 = vector.extract_strided_slice %538 {offsets = [3, 0], sizes = [1, 1], strides = [1, 1]} : vector<4x1xf32> to vector<1x1xf32>
    %555 = vector.broadcast %554 : vector<1x1xf32> to vector<16x1xf32>
    %556 = arith.mulf %553, %555 : vector<16x1xf32>
    %557 = arith.addf %552, %556 : vector<16x1xf32>
    %558 = arith.addf %557, %7 : vector<16x1xf32>
    %559 = arith.negf %558 : vector<16x1xf32>
    %560 = math.exp %559 : vector<16x1xf32>
    %cst_88 = arith.constant 1.000000e+00 : f32
    %561 = vector.broadcast %cst_88 : f32 to vector<16x1xf32>
    %562 = arith.addf %561, %560 : vector<16x1xf32>
    %563 = arith.divf %561, %562 : vector<16x1xf32>
    %564 = vector.broadcast %563 : vector<16x1xf32> to vector<16x64xf32>
    %565 = arith.mulf %449, %564 : vector<16x64xf32>
    %566 = vector.extract_strided_slice %445 {offsets = [0, 64], sizes = [16, 64], strides = [1, 1]} : vector<16x128xf32> to vector<16x64xf32>
    %cst_89 = arith.constant dense<0.000000e+00> : vector<16xf32>
    %567 = vector.multi_reduction <add>, %566, %cst_89 [1] : vector<16x64xf32> to vector<16xf32>
    %568 = vector.shape_cast %567 : vector<16xf32> to vector<16x1xf32>
    %cst_90 = arith.constant 1.562500e-02 : f32
    %569 = vector.broadcast %cst_90 : f32 to vector<16x1xf32>
    %570 = arith.mulf %568, %569 : vector<16x1xf32>
    %571 = vector.extract_strided_slice %446 {offsets = [0, 0], sizes = [4, 1], strides = [1, 1]} : vector<4x16xf32> to vector<4x1xf32>
    %572 = vector.extract_strided_slice %570 {offsets = [0, 0], sizes = [1, 1], strides = [1, 1]} : vector<16x1xf32> to vector<1x1xf32>
    %573 = vector.broadcast %572 : vector<1x1xf32> to vector<4x1xf32>
    %574 = arith.mulf %571, %573 : vector<4x1xf32>
    %575 = vector.extract_strided_slice %446 {offsets = [0, 1], sizes = [4, 1], strides = [1, 1]} : vector<4x16xf32> to vector<4x1xf32>
    %576 = vector.extract_strided_slice %570 {offsets = [1, 0], sizes = [1, 1], strides = [1, 1]} : vector<16x1xf32> to vector<1x1xf32>
    %577 = vector.broadcast %576 : vector<1x1xf32> to vector<4x1xf32>
    %578 = arith.mulf %575, %577 : vector<4x1xf32>
    %579 = arith.addf %574, %578 : vector<4x1xf32>
    %580 = vector.extract_strided_slice %446 {offsets = [0, 2], sizes = [4, 1], strides = [1, 1]} : vector<4x16xf32> to vector<4x1xf32>
    %581 = vector.extract_strided_slice %570 {offsets = [2, 0], sizes = [1, 1], strides = [1, 1]} : vector<16x1xf32> to vector<1x1xf32>
    %582 = vector.broadcast %581 : vector<1x1xf32> to vector<4x1xf32>
    %583 = arith.mulf %580, %582 : vector<4x1xf32>
    %584 = arith.addf %579, %583 : vector<4x1xf32>
    %585 = vector.extract_strided_slice %446 {offsets = [0, 3], sizes = [4, 1], strides = [1, 1]} : vector<4x16xf32> to vector<4x1xf32>
    %586 = vector.extract_strided_slice %570 {offsets = [3, 0], sizes = [1, 1], strides = [1, 1]} : vector<16x1xf32> to vector<1x1xf32>
    %587 = vector.broadcast %586 : vector<1x1xf32> to vector<4x1xf32>
    %588 = arith.mulf %585, %587 : vector<4x1xf32>
    %589 = arith.addf %584, %588 : vector<4x1xf32>
    %590 = vector.extract_strided_slice %446 {offsets = [0, 4], sizes = [4, 1], strides = [1, 1]} : vector<4x16xf32> to vector<4x1xf32>
    %591 = vector.extract_strided_slice %570 {offsets = [4, 0], sizes = [1, 1], strides = [1, 1]} : vector<16x1xf32> to vector<1x1xf32>
    %592 = vector.broadcast %591 : vector<1x1xf32> to vector<4x1xf32>
    %593 = arith.mulf %590, %592 : vector<4x1xf32>
    %594 = arith.addf %589, %593 : vector<4x1xf32>
    %595 = vector.extract_strided_slice %446 {offsets = [0, 5], sizes = [4, 1], strides = [1, 1]} : vector<4x16xf32> to vector<4x1xf32>
    %596 = vector.extract_strided_slice %570 {offsets = [5, 0], sizes = [1, 1], strides = [1, 1]} : vector<16x1xf32> to vector<1x1xf32>
    %597 = vector.broadcast %596 : vector<1x1xf32> to vector<4x1xf32>
    %598 = arith.mulf %595, %597 : vector<4x1xf32>
    %599 = arith.addf %594, %598 : vector<4x1xf32>
    %600 = vector.extract_strided_slice %446 {offsets = [0, 6], sizes = [4, 1], strides = [1, 1]} : vector<4x16xf32> to vector<4x1xf32>
    %601 = vector.extract_strided_slice %570 {offsets = [6, 0], sizes = [1, 1], strides = [1, 1]} : vector<16x1xf32> to vector<1x1xf32>
    %602 = vector.broadcast %601 : vector<1x1xf32> to vector<4x1xf32>
    %603 = arith.mulf %600, %602 : vector<4x1xf32>
    %604 = arith.addf %599, %603 : vector<4x1xf32>
    %605 = vector.extract_strided_slice %446 {offsets = [0, 7], sizes = [4, 1], strides = [1, 1]} : vector<4x16xf32> to vector<4x1xf32>
    %606 = vector.extract_strided_slice %570 {offsets = [7, 0], sizes = [1, 1], strides = [1, 1]} : vector<16x1xf32> to vector<1x1xf32>
    %607 = vector.broadcast %606 : vector<1x1xf32> to vector<4x1xf32>
    %608 = arith.mulf %605, %607 : vector<4x1xf32>
    %609 = arith.addf %604, %608 : vector<4x1xf32>
    %610 = vector.extract_strided_slice %446 {offsets = [0, 8], sizes = [4, 1], strides = [1, 1]} : vector<4x16xf32> to vector<4x1xf32>
    %611 = vector.extract_strided_slice %570 {offsets = [8, 0], sizes = [1, 1], strides = [1, 1]} : vector<16x1xf32> to vector<1x1xf32>
    %612 = vector.broadcast %611 : vector<1x1xf32> to vector<4x1xf32>
    %613 = arith.mulf %610, %612 : vector<4x1xf32>
    %614 = arith.addf %609, %613 : vector<4x1xf32>
    %615 = vector.extract_strided_slice %446 {offsets = [0, 9], sizes = [4, 1], strides = [1, 1]} : vector<4x16xf32> to vector<4x1xf32>
    %616 = vector.extract_strided_slice %570 {offsets = [9, 0], sizes = [1, 1], strides = [1, 1]} : vector<16x1xf32> to vector<1x1xf32>
    %617 = vector.broadcast %616 : vector<1x1xf32> to vector<4x1xf32>
    %618 = arith.mulf %615, %617 : vector<4x1xf32>
    %619 = arith.addf %614, %618 : vector<4x1xf32>
    %620 = vector.extract_strided_slice %446 {offsets = [0, 10], sizes = [4, 1], strides = [1, 1]} : vector<4x16xf32> to vector<4x1xf32>
    %621 = vector.extract_strided_slice %570 {offsets = [10, 0], sizes = [1, 1], strides = [1, 1]} : vector<16x1xf32> to vector<1x1xf32>
    %622 = vector.broadcast %621 : vector<1x1xf32> to vector<4x1xf32>
    %623 = arith.mulf %620, %622 : vector<4x1xf32>
    %624 = arith.addf %619, %623 : vector<4x1xf32>
    %625 = vector.extract_strided_slice %446 {offsets = [0, 11], sizes = [4, 1], strides = [1, 1]} : vector<4x16xf32> to vector<4x1xf32>
    %626 = vector.extract_strided_slice %570 {offsets = [11, 0], sizes = [1, 1], strides = [1, 1]} : vector<16x1xf32> to vector<1x1xf32>
    %627 = vector.broadcast %626 : vector<1x1xf32> to vector<4x1xf32>
    %628 = arith.mulf %625, %627 : vector<4x1xf32>
    %629 = arith.addf %624, %628 : vector<4x1xf32>
    %630 = vector.extract_strided_slice %446 {offsets = [0, 12], sizes = [4, 1], strides = [1, 1]} : vector<4x16xf32> to vector<4x1xf32>
    %631 = vector.extract_strided_slice %570 {offsets = [12, 0], sizes = [1, 1], strides = [1, 1]} : vector<16x1xf32> to vector<1x1xf32>
    %632 = vector.broadcast %631 : vector<1x1xf32> to vector<4x1xf32>
    %633 = arith.mulf %630, %632 : vector<4x1xf32>
    %634 = arith.addf %629, %633 : vector<4x1xf32>
    %635 = vector.extract_strided_slice %446 {offsets = [0, 13], sizes = [4, 1], strides = [1, 1]} : vector<4x16xf32> to vector<4x1xf32>
    %636 = vector.extract_strided_slice %570 {offsets = [13, 0], sizes = [1, 1], strides = [1, 1]} : vector<16x1xf32> to vector<1x1xf32>
    %637 = vector.broadcast %636 : vector<1x1xf32> to vector<4x1xf32>
    %638 = arith.mulf %635, %637 : vector<4x1xf32>
    %639 = arith.addf %634, %638 : vector<4x1xf32>
    %640 = vector.extract_strided_slice %446 {offsets = [0, 14], sizes = [4, 1], strides = [1, 1]} : vector<4x16xf32> to vector<4x1xf32>
    %641 = vector.extract_strided_slice %570 {offsets = [14, 0], sizes = [1, 1], strides = [1, 1]} : vector<16x1xf32> to vector<1x1xf32>
    %642 = vector.broadcast %641 : vector<1x1xf32> to vector<4x1xf32>
    %643 = arith.mulf %640, %642 : vector<4x1xf32>
    %644 = arith.addf %639, %643 : vector<4x1xf32>
    %645 = vector.extract_strided_slice %446 {offsets = [0, 15], sizes = [4, 1], strides = [1, 1]} : vector<4x16xf32> to vector<4x1xf32>
    %646 = vector.extract_strided_slice %570 {offsets = [15, 0], sizes = [1, 1], strides = [1, 1]} : vector<16x1xf32> to vector<1x1xf32>
    %647 = vector.broadcast %646 : vector<1x1xf32> to vector<4x1xf32>
    %648 = arith.mulf %645, %647 : vector<4x1xf32>
    %649 = arith.addf %644, %648 : vector<4x1xf32>
    %650 = arith.addf %649, %447 : vector<4x1xf32>
    %cst_91 = arith.constant 0.000000e+00 : f32
    %651 = vector.broadcast %cst_91 : f32 to vector<4x1xf32>
    %652 = arith.cmpf oge, %650, %651 : vector<4x1xf32>
    %cst_92 = arith.constant 3.000000e-01 : f32
    %653 = vector.broadcast %cst_92 : f32 to vector<4x1xf32>
    %654 = arith.mulf %653, %650 : vector<4x1xf32>
    %655 = arith.select %652, %650, %654 : vector<4x1xi1>, vector<4x1xf32>
    %656 = vector.extract_strided_slice %448 {offsets = [0, 0], sizes = [16, 1], strides = [1, 1]} : vector<16x4xf32> to vector<16x1xf32>
    %657 = vector.extract_strided_slice %655 {offsets = [0, 0], sizes = [1, 1], strides = [1, 1]} : vector<4x1xf32> to vector<1x1xf32>
    %658 = vector.broadcast %657 : vector<1x1xf32> to vector<16x1xf32>
    %659 = arith.mulf %656, %658 : vector<16x1xf32>
    %660 = vector.extract_strided_slice %448 {offsets = [0, 1], sizes = [16, 1], strides = [1, 1]} : vector<16x4xf32> to vector<16x1xf32>
    %661 = vector.extract_strided_slice %655 {offsets = [1, 0], sizes = [1, 1], strides = [1, 1]} : vector<4x1xf32> to vector<1x1xf32>
    %662 = vector.broadcast %661 : vector<1x1xf32> to vector<16x1xf32>
    %663 = arith.mulf %660, %662 : vector<16x1xf32>
    %664 = arith.addf %659, %663 : vector<16x1xf32>
    %665 = vector.extract_strided_slice %448 {offsets = [0, 2], sizes = [16, 1], strides = [1, 1]} : vector<16x4xf32> to vector<16x1xf32>
    %666 = vector.extract_strided_slice %655 {offsets = [2, 0], sizes = [1, 1], strides = [1, 1]} : vector<4x1xf32> to vector<1x1xf32>
    %667 = vector.broadcast %666 : vector<1x1xf32> to vector<16x1xf32>
    %668 = arith.mulf %665, %667 : vector<16x1xf32>
    %669 = arith.addf %664, %668 : vector<16x1xf32>
    %670 = vector.extract_strided_slice %448 {offsets = [0, 3], sizes = [16, 1], strides = [1, 1]} : vector<16x4xf32> to vector<16x1xf32>
    %671 = vector.extract_strided_slice %655 {offsets = [3, 0], sizes = [1, 1], strides = [1, 1]} : vector<4x1xf32> to vector<1x1xf32>
    %672 = vector.broadcast %671 : vector<1x1xf32> to vector<16x1xf32>
    %673 = arith.mulf %670, %672 : vector<16x1xf32>
    %674 = arith.addf %669, %673 : vector<16x1xf32>
    %675 = arith.addf %674, %7 : vector<16x1xf32>
    %676 = arith.negf %675 : vector<16x1xf32>
    %677 = math.exp %676 : vector<16x1xf32>
    %cst_93 = arith.constant 1.000000e+00 : f32
    %678 = vector.broadcast %cst_93 : f32 to vector<16x1xf32>
    %679 = arith.addf %678, %677 : vector<16x1xf32>
    %680 = arith.divf %678, %679 : vector<16x1xf32>
    %681 = vector.broadcast %680 : vector<16x1xf32> to vector<16x64xf32>
    %682 = arith.mulf %566, %681 : vector<16x64xf32>
    %683 = tpu.concatenate %565, %682 in 1 : vector<16x64xf32>, vector<16x64xf32> -> vector<16x128xf32>
    %c0_94 = arith.constant 0 : index
    %c0_95 = arith.constant 0 : index
    %684 = vector.load %arg8[%c0_94, %c0_95] : memref<8x3xf32, #tpu.memory_space<vmem>>, vector<8x1xf32>
    %c0_96 = arith.constant 0 : index
    %c1_97 = arith.constant 1 : index
    %685 = vector.load %arg8[%c0_96, %c1_97] : memref<8x3xf32, #tpu.memory_space<vmem>>, vector<8x1xf32>
    %c0_98 = arith.constant 0 : index
    %c2_99 = arith.constant 2 : index
    %686 = vector.load %arg8[%c0_98, %c2_99] : memref<8x3xf32, #tpu.memory_space<vmem>>, vector<8x1xf32>
    %c0_100 = arith.constant 0 : index
    %c0_101 = arith.constant 0 : index
    %687 = vector.load %arg7[%c0_100, %c0_101] : memref<8x16xf32, #tpu.memory_space<vmem>>, vector<8x16xf32>
    %688 = vector.extract_strided_slice %687 {offsets = [0, 0], sizes = [8, 1], strides = [1, 1]} : vector<8x16xf32> to vector<8x1xf32>
    %689 = vector.extract_strided_slice %683 {offsets = [0, 0], sizes = [1, 128], strides = [1, 1]} : vector<16x128xf32> to vector<1x128xf32>
    %690 = vector.broadcast %688 : vector<8x1xf32> to vector<8x128xf32>
    %691 = vector.broadcast %689 : vector<1x128xf32> to vector<8x128xf32>
    %692 = arith.mulf %690, %691 : vector<8x128xf32>
    %693 = vector.extract_strided_slice %687 {offsets = [0, 1], sizes = [8, 1], strides = [1, 1]} : vector<8x16xf32> to vector<8x1xf32>
    %694 = vector.extract_strided_slice %683 {offsets = [1, 0], sizes = [1, 128], strides = [1, 1]} : vector<16x128xf32> to vector<1x128xf32>
    %695 = vector.broadcast %693 : vector<8x1xf32> to vector<8x128xf32>
    %696 = vector.broadcast %694 : vector<1x128xf32> to vector<8x128xf32>
    %697 = arith.mulf %695, %696 : vector<8x128xf32>
    %698 = arith.addf %692, %697 : vector<8x128xf32>
    %699 = vector.extract_strided_slice %687 {offsets = [0, 2], sizes = [8, 1], strides = [1, 1]} : vector<8x16xf32> to vector<8x1xf32>
    %700 = vector.extract_strided_slice %683 {offsets = [2, 0], sizes = [1, 128], strides = [1, 1]} : vector<16x128xf32> to vector<1x128xf32>
    %701 = vector.broadcast %699 : vector<8x1xf32> to vector<8x128xf32>
    %702 = vector.broadcast %700 : vector<1x128xf32> to vector<8x128xf32>
    %703 = arith.mulf %701, %702 : vector<8x128xf32>
    %704 = arith.addf %698, %703 : vector<8x128xf32>
    %705 = vector.extract_strided_slice %687 {offsets = [0, 3], sizes = [8, 1], strides = [1, 1]} : vector<8x16xf32> to vector<8x1xf32>
    %706 = vector.extract_strided_slice %683 {offsets = [3, 0], sizes = [1, 128], strides = [1, 1]} : vector<16x128xf32> to vector<1x128xf32>
    %707 = vector.broadcast %705 : vector<8x1xf32> to vector<8x128xf32>
    %708 = vector.broadcast %706 : vector<1x128xf32> to vector<8x128xf32>
    %709 = arith.mulf %707, %708 : vector<8x128xf32>
    %710 = arith.addf %704, %709 : vector<8x128xf32>
    %711 = vector.extract_strided_slice %687 {offsets = [0, 4], sizes = [8, 1], strides = [1, 1]} : vector<8x16xf32> to vector<8x1xf32>
    %712 = vector.extract_strided_slice %683 {offsets = [4, 0], sizes = [1, 128], strides = [1, 1]} : vector<16x128xf32> to vector<1x128xf32>
    %713 = vector.broadcast %711 : vector<8x1xf32> to vector<8x128xf32>
    %714 = vector.broadcast %712 : vector<1x128xf32> to vector<8x128xf32>
    %715 = arith.mulf %713, %714 : vector<8x128xf32>
    %716 = arith.addf %710, %715 : vector<8x128xf32>
    %717 = vector.extract_strided_slice %687 {offsets = [0, 5], sizes = [8, 1], strides = [1, 1]} : vector<8x16xf32> to vector<8x1xf32>
    %718 = vector.extract_strided_slice %683 {offsets = [5, 0], sizes = [1, 128], strides = [1, 1]} : vector<16x128xf32> to vector<1x128xf32>
    %719 = vector.broadcast %717 : vector<8x1xf32> to vector<8x128xf32>
    %720 = vector.broadcast %718 : vector<1x128xf32> to vector<8x128xf32>
    %721 = arith.mulf %719, %720 : vector<8x128xf32>
    %722 = arith.addf %716, %721 : vector<8x128xf32>
    %723 = vector.extract_strided_slice %687 {offsets = [0, 6], sizes = [8, 1], strides = [1, 1]} : vector<8x16xf32> to vector<8x1xf32>
    %724 = vector.extract_strided_slice %683 {offsets = [6, 0], sizes = [1, 128], strides = [1, 1]} : vector<16x128xf32> to vector<1x128xf32>
    %725 = vector.broadcast %723 : vector<8x1xf32> to vector<8x128xf32>
    %726 = vector.broadcast %724 : vector<1x128xf32> to vector<8x128xf32>
    %727 = arith.mulf %725, %726 : vector<8x128xf32>
    %728 = arith.addf %722, %727 : vector<8x128xf32>
    %729 = vector.extract_strided_slice %687 {offsets = [0, 7], sizes = [8, 1], strides = [1, 1]} : vector<8x16xf32> to vector<8x1xf32>
    %730 = vector.extract_strided_slice %683 {offsets = [7, 0], sizes = [1, 128], strides = [1, 1]} : vector<16x128xf32> to vector<1x128xf32>
    %731 = vector.broadcast %729 : vector<8x1xf32> to vector<8x128xf32>
    %732 = vector.broadcast %730 : vector<1x128xf32> to vector<8x128xf32>
    %733 = arith.mulf %731, %732 : vector<8x128xf32>
    %734 = arith.addf %728, %733 : vector<8x128xf32>
    %735 = vector.extract_strided_slice %687 {offsets = [0, 8], sizes = [8, 1], strides = [1, 1]} : vector<8x16xf32> to vector<8x1xf32>
    %736 = vector.extract_strided_slice %683 {offsets = [8, 0], sizes = [1, 128], strides = [1, 1]} : vector<16x128xf32> to vector<1x128xf32>
    %737 = vector.broadcast %735 : vector<8x1xf32> to vector<8x128xf32>
    %738 = vector.broadcast %736 : vector<1x128xf32> to vector<8x128xf32>
    %739 = arith.mulf %737, %738 : vector<8x128xf32>
    %740 = arith.addf %734, %739 : vector<8x128xf32>
    %741 = vector.extract_strided_slice %687 {offsets = [0, 9], sizes = [8, 1], strides = [1, 1]} : vector<8x16xf32> to vector<8x1xf32>
    %742 = vector.extract_strided_slice %683 {offsets = [9, 0], sizes = [1, 128], strides = [1, 1]} : vector<16x128xf32> to vector<1x128xf32>
    %743 = vector.broadcast %741 : vector<8x1xf32> to vector<8x128xf32>
    %744 = vector.broadcast %742 : vector<1x128xf32> to vector<8x128xf32>
    %745 = arith.mulf %743, %744 : vector<8x128xf32>
    %746 = arith.addf %740, %745 : vector<8x128xf32>
    %747 = vector.extract_strided_slice %687 {offsets = [0, 10], sizes = [8, 1], strides = [1, 1]} : vector<8x16xf32> to vector<8x1xf32>
    %748 = vector.extract_strided_slice %683 {offsets = [10, 0], sizes = [1, 128], strides = [1, 1]} : vector<16x128xf32> to vector<1x128xf32>
    %749 = vector.broadcast %747 : vector<8x1xf32> to vector<8x128xf32>
    %750 = vector.broadcast %748 : vector<1x128xf32> to vector<8x128xf32>
    %751 = arith.mulf %749, %750 : vector<8x128xf32>
    %752 = arith.addf %746, %751 : vector<8x128xf32>
    %753 = vector.extract_strided_slice %687 {offsets = [0, 11], sizes = [8, 1], strides = [1, 1]} : vector<8x16xf32> to vector<8x1xf32>
    %754 = vector.extract_strided_slice %683 {offsets = [11, 0], sizes = [1, 128], strides = [1, 1]} : vector<16x128xf32> to vector<1x128xf32>
    %755 = vector.broadcast %753 : vector<8x1xf32> to vector<8x128xf32>
    %756 = vector.broadcast %754 : vector<1x128xf32> to vector<8x128xf32>
    %757 = arith.mulf %755, %756 : vector<8x128xf32>
    %758 = arith.addf %752, %757 : vector<8x128xf32>
    %759 = vector.extract_strided_slice %687 {offsets = [0, 12], sizes = [8, 1], strides = [1, 1]} : vector<8x16xf32> to vector<8x1xf32>
    %760 = vector.extract_strided_slice %683 {offsets = [12, 0], sizes = [1, 128], strides = [1, 1]} : vector<16x128xf32> to vector<1x128xf32>
    %761 = vector.broadcast %759 : vector<8x1xf32> to vector<8x128xf32>
    %762 = vector.broadcast %760 : vector<1x128xf32> to vector<8x128xf32>
    %763 = arith.mulf %761, %762 : vector<8x128xf32>
    %764 = arith.addf %758, %763 : vector<8x128xf32>
    %765 = vector.extract_strided_slice %687 {offsets = [0, 13], sizes = [8, 1], strides = [1, 1]} : vector<8x16xf32> to vector<8x1xf32>
    %766 = vector.extract_strided_slice %683 {offsets = [13, 0], sizes = [1, 128], strides = [1, 1]} : vector<16x128xf32> to vector<1x128xf32>
    %767 = vector.broadcast %765 : vector<8x1xf32> to vector<8x128xf32>
    %768 = vector.broadcast %766 : vector<1x128xf32> to vector<8x128xf32>
    %769 = arith.mulf %767, %768 : vector<8x128xf32>
    %770 = arith.addf %764, %769 : vector<8x128xf32>
    %771 = vector.extract_strided_slice %687 {offsets = [0, 14], sizes = [8, 1], strides = [1, 1]} : vector<8x16xf32> to vector<8x1xf32>
    %772 = vector.extract_strided_slice %683 {offsets = [14, 0], sizes = [1, 128], strides = [1, 1]} : vector<16x128xf32> to vector<1x128xf32>
    %773 = vector.broadcast %771 : vector<8x1xf32> to vector<8x128xf32>
    %774 = vector.broadcast %772 : vector<1x128xf32> to vector<8x128xf32>
    %775 = arith.mulf %773, %774 : vector<8x128xf32>
    %776 = arith.addf %770, %775 : vector<8x128xf32>
    %777 = vector.extract_strided_slice %687 {offsets = [0, 15], sizes = [8, 1], strides = [1, 1]} : vector<8x16xf32> to vector<8x1xf32>
    %778 = vector.extract_strided_slice %683 {offsets = [15, 0], sizes = [1, 128], strides = [1, 1]} : vector<16x128xf32> to vector<1x128xf32>
    %779 = vector.broadcast %777 : vector<8x1xf32> to vector<8x128xf32>
    %780 = vector.broadcast %778 : vector<1x128xf32> to vector<8x128xf32>
    %781 = arith.mulf %779, %780 : vector<8x128xf32>
    %782 = arith.addf %776, %781 : vector<8x128xf32>
    %783 = vector.broadcast %684 : vector<8x1xf32> to vector<8x128xf32>
    %784 = arith.addf %782, %783 : vector<8x128xf32>
    %cst_102 = arith.constant dense<0.000000e+00> : vector<8xf32>
    %785 = vector.multi_reduction <add>, %784, %cst_102 [1] : vector<8x128xf32> to vector<8xf32>
    %786 = vector.shape_cast %785 : vector<8xf32> to vector<8x1xf32>
    %787 = arith.mulf %784, %784 : vector<8x128xf32>
    %cst_103 = arith.constant dense<0.000000e+00> : vector<8xf32>
    %788 = vector.multi_reduction <add>, %787, %cst_103 [1] : vector<8x128xf32> to vector<8xf32>
    %789 = vector.shape_cast %788 : vector<8xf32> to vector<8x1xf32>
    %cst_104 = arith.constant 7.812500e-03 : f32
    %790 = vector.broadcast %cst_104 : f32 to vector<8x1xf32>
    %791 = arith.mulf %786, %790 : vector<8x1xf32>
    %cst_105 = arith.constant 7.812500e-03 : f32
    %792 = vector.broadcast %cst_105 : f32 to vector<8x1xf32>
    %793 = arith.mulf %789, %792 : vector<8x1xf32>
    %794 = arith.mulf %791, %791 : vector<8x1xf32>
    %795 = arith.subf %793, %794 : vector<8x1xf32>
    %cst_106 = arith.constant 0.000000e+00 : f32
    %796 = vector.broadcast %cst_106 : f32 to vector<8x1xf32>
    %797 = arith.maximumf %795, %796 : vector<8x1xf32>
    %cst_107 = arith.constant 1.000000e-03 : f32
    %798 = vector.broadcast %cst_107 : f32 to vector<8x1xf32>
    %799 = arith.addf %797, %798 : vector<8x1xf32>
    %800 = math.rsqrt %799 : vector<8x1xf32>
    %801 = arith.mulf %800, %685 : vector<8x1xf32>
    %802 = arith.mulf %791, %801 : vector<8x1xf32>
    %803 = arith.subf %686, %802 : vector<8x1xf32>
    %804 = vector.broadcast %801 : vector<8x1xf32> to vector<8x128xf32>
    %805 = arith.mulf %784, %804 : vector<8x128xf32>
    %806 = vector.broadcast %803 : vector<8x1xf32> to vector<8x128xf32>
    %807 = arith.addf %805, %806 : vector<8x128xf32>
    %c0_108 = arith.constant 0 : index
    %c0_109 = arith.constant 0 : index
    %808 = vector.load %arg9[%c0_108, %c0_109] : memref<8x128xf32, #tpu.memory_space<vmem>>, vector<8x128xf32>
    tpu.vector_store %arg9[%c0_108, %c0_109], %807 {strides = array<i32>} : memref<8x128xf32, #tpu.memory_space<vmem>>, vector<8x128xf32>,
    return
  }
}

</mosaic_0001>

<llo_original>
// kernel: block_forward.1
$region0: #{block_forward.1}
  #allocation0 [shape = 'u32[]', space=smem, size = 0x4, offset = 0x4, fixed_abs, tag = 'smem constant byte address 0x4 - core index']
  #allocation1 [shape = 'u32[144,128]{1,0:T(1,128)}', space=vmem, size = 0x12000, scoped, tag = 'internal scratch']
  %s0 = inlined_call_operand.vmem [shape: f32[4,512], index: 0, kind: input, shape index: {}]
  %s1 = inlined_call_operand.vmem [shape: f32[9,5,128], index: 1, kind: input, shape index: {}]
  %s2 = inlined_call_operand.vmem [shape: f32[16,4], index: 2, kind: input, shape index: {}]
  %s3 = inlined_call_operand.vmem [shape: f32[16,16], index: 3, kind: input, shape index: {}]
  %s4 = inlined_call_operand.vmem [shape: f32[4,16], index: 4, kind: input, shape index: {}]
  %s5 = inlined_call_operand.vmem [shape: f32[4,1], index: 5, kind: input, shape index: {}]
  %s6 = inlined_call_operand.vmem [shape: f32[16,4], index: 6, kind: input, shape index: {}]
  %s7 = inlined_call_operand.vmem [shape: f32[8,16], index: 7, kind: input, shape index: {}]
  %s8 = inlined_call_operand.vmem [shape: f32[8,3], index: 8, kind: input, shape index: {}]
  %s9 = inlined_call_operand.vmem [shape: f32[8,128], index: 9, kind: output, shape index: {}]
  %s10 = sld [smem:[#allocation0]]
  $region46: #{block_forward.1} parent=0
    _
  %s12 = ssub.s32 1, %s10
  %s13 = scalar_select 0, %s12, %s10
  // Predicated region
  $region2: #{block_forward.1} parent=0 // pred_check
    _
  $region3: #{block_forward.1} parent=0 // pred_check_branch
    %15 = sbr.rel (0) target = $region5
  $region4: #{block_forward.1} parent=0 // pred_region
    _
  $region5: #{block_forward.1} parent=0 // pred_fallthru
    _
  // Predicated region
  $region6: #{block_forward.1} parent=0 // pred_check
    _
  $region7: #{block_forward.1} parent=0 // pred_check_branch
    %17 = sbr.rel (0) target = $region9
  $region8: #{block_forward.1} parent=0 // pred_region
    _
  $region9: #{block_forward.1} parent=0 // pred_fallthru
    _
  // Predicated region
  $region10: #{block_forward.1} parent=0 // pred_check
    _
  $region11: #{block_forward.1} parent=0 // pred_check_branch
    %19 = sbr.rel (0) target = $region13
  $region12: #{block_forward.1} parent=0 // pred_region
    _
  $region13: #{block_forward.1} parent=0 // pred_fallthru
    _
  // Predicated region
  $region14: #{block_forward.1} parent=0 // pred_check
    _
  $region15: #{block_forward.1} parent=0 // pred_check_branch
    %21 = sbr.rel (0) target = $region17
  $region16: #{block_forward.1} parent=0 // pred_region
    _
  $region17: #{block_forward.1} parent=0 // pred_fallthru
    _
  // Predicated region
  $region18: #{block_forward.1} parent=0 // pred_check
    _
  $region19: #{block_forward.1} parent=0 // pred_check_branch
    %23 = sbr.rel (0) target = $region21
  $region20: #{block_forward.1} parent=0 // pred_region
    _
  $region21: #{block_forward.1} parent=0 // pred_fallthru
    _
  // Predicated region
  $region22: #{block_forward.1} parent=0 // pred_check
    _
  $region23: #{block_forward.1} parent=0 // pred_check_branch
    %25 = sbr.rel (0) target = $region25
  $region24: #{block_forward.1} parent=0 // pred_region
    _
  $region25: #{block_forward.1} parent=0 // pred_fallthru
    _
  // Predicated region
  $region26: #{block_forward.1} parent=0 // pred_check
    _
  $region27: #{block_forward.1} parent=0 // pred_check_branch
    %27 = sbr.rel (0) target = $region29
  $region28: #{block_forward.1} parent=0 // pred_region
    _
  $region29: #{block_forward.1} parent=0 // pred_fallthru
    _
  // Predicated region
  $region30: #{block_forward.1} parent=0 // pred_check
    _
  $region31: #{block_forward.1} parent=0 // pred_check_branch
    %29 = sbr.rel (0) target = $region33
  $region32: #{block_forward.1} parent=0 // pred_region
    _
  $region33: #{block_forward.1} parent=0 // pred_fallthru
    _
  // Predicated region
  $region34: #{block_forward.1} parent=0 // pred_check
    _
  $region35: #{block_forward.1} parent=0 // pred_check_branch
    %31 = sbr.rel (0) target = $region37
  $region36: #{block_forward.1} parent=0 // pred_region
    _
  $region37: #{block_forward.1} parent=0 // pred_fallthru
    _
  %v32 = vld [vmem:[%s2] sm:$0xff]
  %v33 = vld [vmem:[%s2 + $0x8] sm:$0xff]
  %v34 = vld [vmem:[%s3] sm:$0xff]
  %v35 = vld [vmem:[%s3 + $0x8] sm:$0xff]
  %v36 = vld [vmem:[%s0] sm:$0xff]
  %v37 = vld [vmem:[%s0 + $0x8] sm:$0xff]
  %39 = vset.pattern.permute.xlu0 0
  %40 = vperm.xlu0 %39, %v32
  %v41 = vpop.permute.xlu0 %40
  %44 = vset.pattern.permute.xlu0 0
  %45 = vperm.xlu0 %44, %v33
  %v46 = vpop.permute.xlu0 %45
  %v50 = vlaneseq
  %v51 = vshrl.u32 %v50, 7
  %v52 = vsub.s32 0, %v51
  %v53 = vrot.slane %v36, %v52
  %v54 = vlaneseq
  %v55 = vshrl.u32 %v54, 7
  %v56 = vsub.s32 4, %v55
  %v57 = vrot.slane %v36, %v56
  %v58 = vlaneseq
  %v59 = vshrl.u32 %v58, 7
  %v60 = vsub.s32 0, %v59
  %v61 = vrot.slane %v37, %v60
  %v62 = vlaneseq
  %v63 = vshrl.u32 %v62, 7
  %v64 = vsub.s32 4, %v63
  %v65 = vrot.slane %v37, %v64
  %v70 = vlaneseq
  %v71 = vshrl.u32 %v70, 7
  %v72 = vsub.s32 0, %v71
  %v73 = vrot.slane %v53, %v72
  %v74 = vlaneseq
  %v75 = vshrl.u32 %v74, 7
  %v76 = vsub.s32 0, %v75
  %v77 = vrot.slane %v57, %v76
  %v78 = vlaneseq
  %v79 = vshrl.u32 %v78, 7
  %v80 = vsub.s32 0, %v79
  %v81 = vrot.slane %v61, %v80
  %v82 = vlaneseq
  %v83 = vshrl.u32 %v82, 7
  %v84 = vsub.s32 0, %v83
  %v85 = vrot.slane %v65, %v84
  %v86 = vmul.f32 %v41, %v73
  %v87 = vmul.f32 %v41, %v77
  %v88 = vmul.f32 %v41, %v81
  %v89 = vmul.f32 %v41, %v85
  %v90 = vmul.f32 %v46, %v73
  %v91 = vmul.f32 %v46, %v77
  %v92 = vmul.f32 %v46, %v81
  %v93 = vmul.f32 %v46, %v85
  %94 = vset.pattern.permute.xlu0 1
  %95 = vperm.xlu0 %94, %v32
  %v96 = vpop.permute.xlu0 %95
  %98 = vset.pattern.permute.xlu0 1
  %99 = vperm.xlu0 %98, %v33
  %v100 = vpop.permute.xlu0 %99
  %v102 = vlaneseq
  %v103 = vshrl.u32 %v102, 7
  %v104 = vsub.s32 1, %v103
  %v105 = vrot.slane %v36, %v104
  %v106 = vlaneseq
  %v107 = vshrl.u32 %v106, 7
  %v108 = vsub.s32 5, %v107
  %v109 = vrot.slane %v36, %v108
  %v110 = vlaneseq
  %v111 = vshrl.u32 %v110, 7
  %v112 = vsub.s32 1, %v111
  %v113 = vrot.slane %v37, %v112
  %v114 = vlaneseq
  %v115 = vshrl.u32 %v114, 7
  %v116 = vsub.s32 5, %v115
  %v117 = vrot.slane %v37, %v116
  %v122 = vlaneseq
  %v123 = vshrl.u32 %v122, 7
  %v124 = vsub.s32 1, %v123
  %v125 = vrot.slane %v105, %v124
  %v126 = vlaneseq
  %v127 = vshrl.u32 %v126, 7
  %v128 = vsub.s32 1, %v127
  %v129 = vrot.slane %v109, %v128
  %v130 = vlaneseq
  %v131 = vshrl.u32 %v130, 7
  %v132 = vsub.s32 1, %v131
  %v133 = vrot.slane %v113, %v132
  %v134 = vlaneseq
  %v135 = vshrl.u32 %v134, 7
  %v136 = vsub.s32 1, %v135
  %v137 = vrot.slane %v117, %v136
  %v138 = vmul.f32 %v96, %v125
  %v139 = vmul.f32 %v96, %v129
  %v140 = vmul.f32 %v96, %v133
  %v141 = vmul.f32 %v96, %v137
  %v142 = vmul.f32 %v100, %v125
  %v143 = vmul.f32 %v100, %v129
  %v144 = vmul.f32 %v100, %v133
  %v145 = vmul.f32 %v100, %v137
  %v146 = vadd.f32 %v86, %v138
  %v147 = vadd.f32 %v87, %v139
  %v148 = vadd.f32 %v88, %v140
  %v149 = vadd.f32 %v89, %v141
  %v150 = vadd.f32 %v90, %v142
  %v151 = vadd.f32 %v91, %v143
  %v152 = vadd.f32 %v92, %v144
  %v153 = vadd.f32 %v93, %v145
  %154 = vset.pattern.permute.xlu0 2
  %155 = vperm.xlu0 %154, %v32
  %v156 = vpop.permute.xlu0 %155
  %158 = vset.pattern.permute.xlu0 2
  %159 = vperm.xlu0 %158, %v33
  %v160 = vpop.permute.xlu0 %159
  %v162 = vlaneseq
  %v163 = vshrl.u32 %v162, 7
  %v164 = vsub.s32 2, %v163
  %v165 = vrot.slane %v36, %v164
  %v166 = vlaneseq
  %v167 = vshrl.u32 %v166, 7
  %v168 = vsub.s32 6, %v167
  %v169 = vrot.slane %v36, %v168
  %v170 = vlaneseq
  %v171 = vshrl.u32 %v170, 7
  %v172 = vsub.s32 2, %v171
  %v173 = vrot.slane %v37, %v172
  %v174 = vlaneseq
  %v175 = vshrl.u32 %v174, 7
  %v176 = vsub.s32 6, %v175
  %v177 = vrot.slane %v37, %v176
  %v182 = vlaneseq
  %v183 = vshrl.u32 %v182, 7
  %v184 = vsub.s32 2, %v183
  %v185 = vrot.slane %v165, %v184
  %v186 = vlaneseq
  %v187 = vshrl.u32 %v186, 7
  %v188 = vsub.s32 2, %v187
  %v189 = vrot.slane %v169, %v188
  %v190 = vlaneseq
  %v191 = vshrl.u32 %v190, 7
  %v192 = vsub.s32 2, %v191
  %v193 = vrot.slane %v173, %v192
  %v194 = vlaneseq
  %v195 = vshrl.u32 %v194, 7
  %v196 = vsub.s32 2, %v195
  %v197 = vrot.slane %v177, %v196
  %v198 = vmul.f32 %v156, %v185
  %v199 = vmul.f32 %v156, %v189
  %v200 = vmul.f32 %v156, %v193
  %v201 = vmul.f32 %v156, %v197
  %v202 = vmul.f32 %v160, %v185
  %v203 = vmul.f32 %v160, %v189
  %v204 = vmul.f32 %v160, %v193
  %v205 = vmul.f32 %v160, %v197
  %v206 = vadd.f32 %v146, %v198
  %v207 = vadd.f32 %v147, %v199
  %v208 = vadd.f32 %v148, %v200
  %v209 = vadd.f32 %v149, %v201
  %v210 = vadd.f32 %v150, %v202
  %v211 = vadd.f32 %v151, %v203
  %v212 = vadd.f32 %v152, %v204
  %v213 = vadd.f32 %v153, %v205
  %214 = vset.pattern.permute.xlu0 3
  %215 = vperm.xlu0 %214, %v32
  %v216 = vpop.permute.xlu0 %215
  %218 = vset.pattern.permute.xlu0 3
  %219 = vperm.xlu0 %218, %v33
  %v220 = vpop.permute.xlu0 %219
  %v222 = vlaneseq
  %v223 = vshrl.u32 %v222, 7
  %v224 = vsub.s32 3, %v223
  %v225 = vrot.slane %v36, %v224
  %v226 = vlaneseq
  %v227 = vshrl.u32 %v226, 7
  %v228 = vsub.s32 7, %v227
  %v229 = vrot.slane %v36, %v228
  %v230 = vlaneseq
  %v231 = vshrl.u32 %v230, 7
  %v232 = vsub.s32 3, %v231
  %v233 = vrot.slane %v37, %v232
  %v234 = vlaneseq
  %v235 = vshrl.u32 %v234, 7
  %v236 = vsub.s32 7, %v235
  %v237 = vrot.slane %v37, %v236
  %v242 = vlaneseq
  %v243 = vshrl.u32 %v242, 7
  %v244 = vsub.s32 3, %v243
  %v245 = vrot.slane %v225, %v244
  %v246 = vlaneseq
  %v247 = vshrl.u32 %v246, 7
  %v248 = vsub.s32 3, %v247
  %v249 = vrot.slane %v229, %v248
  %v250 = vlaneseq
  %v251 = vshrl.u32 %v250, 7
  %v252 = vsub.s32 3, %v251
  %v253 = vrot.slane %v233, %v252
  %v254 = vlaneseq
  %v255 = vshrl.u32 %v254, 7
  %v256 = vsub.s32 3, %v255
  %v257 = vrot.slane %v237, %v256
  %v258 = vmul.f32 %v216, %v245
  %v259 = vmul.f32 %v216, %v249
  %v260 = vmul.f32 %v216, %v253
  %v261 = vmul.f32 %v216, %v257
  %v262 = vmul.f32 %v220, %v245
  %v263 = vmul.f32 %v220, %v249
  %v264 = vmul.f32 %v220, %v253
  %v265 = vmul.f32 %v220, %v257
  %v266 = vadd.f32 %v206, %v258
  %v267 = vadd.f32 %v207, %v259
  %v268 = vadd.f32 %v208, %v260
  %v269 = vadd.f32 %v209, %v261
  %v270 = vadd.f32 %v210, %v262
  %v271 = vadd.f32 %v211, %v263
  %v272 = vadd.f32 %v212, %v264
  %v273 = vadd.f32 %v213, %v265
  %275 = vset.pattern.permute.xlu0 0
  %276 = vperm.xlu0 %275, %v34
  %v277 = vpop.permute.xlu0 %276
  %280 = vset.pattern.permute.xlu0 0
  %281 = vperm.xlu0 %280, %v35
  %v282 = vpop.permute.xlu0 %281
  %v284 = vadd.f32 %v266, %v277
  %v285 = vadd.f32 %v267, %v277
  %v286 = vadd.f32 %v268, %v277
  %v287 = vadd.f32 %v269, %v277
  %v288 = vadd.f32 %v270, %v282
  %v289 = vadd.f32 %v271, %v282
  %v290 = vadd.f32 %v272, %v282
  %v291 = vadd.f32 %v273, %v282
  %v292 = vadd.f32 %v284, %v285
  %v293 = vadd.f32 %v292, %v286
  %v294 = vadd.f32 %v293, %v287
  %295 = vadd.xlane.f32.xlu0 %v294
  %v296 = vpop.xlane.xlu0 %295
  %v297 = vadd.f32 %v288, %v289
  %v298 = vadd.f32 %v297, %v290
  %v299 = vadd.f32 %v298, %v291
  %300 = vadd.xlane.f32.xlu0 %v299
  %v301 = vpop.xlane.xlu0 %300
  %v302 = vmul.f32 %v284, %v284
  %v303 = vmul.f32 %v285, %v285
  %v304 = vmul.f32 %v286, %v286
  %v305 = vmul.f32 %v287, %v287
  %v306 = vmul.f32 %v288, %v288
  %v307 = vmul.f32 %v289, %v289
  %v308 = vmul.f32 %v290, %v290
  %v309 = vmul.f32 %v291, %v291
  %v310 = vadd.f32 %v302, %v303
  %v311 = vadd.f32 %v310, %v304
  %v312 = vadd.f32 %v311, %v305
  %313 = vadd.xlane.f32.xlu0 %v312
  %v314 = vpop.xlane.xlu0 %313
  %v315 = vadd.f32 %v306, %v307
  %v316 = vadd.f32 %v315, %v308
  %v317 = vadd.f32 %v316, %v309
  %318 = vadd.xlane.f32.xlu0 %v317
  %v319 = vpop.xlane.xlu0 %318
  %v320 = vmul.f32 %v296, 0.001953125
  %v321 = vmul.f32 %v301, 0.001953125
  %v322 = vmul.f32 %v314, 0.001953125
  %v323 = vmul.f32 %v319, 0.001953125
  %v324 = vmul.f32 %v320, %v320
  %v325 = vmul.f32 %v321, %v321
  %v326 = vsub.f32 %v322, %v324
  %v327 = vsub.f32 %v323, %v325
  %v328 = vmax.f32 %v326, 0.0
  %v329 = vmax.f32 %v327, 0.0
  %v330 = vadd.f32 %v328, 0.001
  %v331 = vadd.f32 %v329, 0.001
  %v332 = vrsqrt.pop %v330
  %v333 = vrsqrt.pop %v331
  %v334 = vmul.f32 %v332, %v34
  %v335 = vmul.f32 %v333, %v35
  %v336 = vmul.f32 %v320, %v334
  %v337 = vmul.f32 %v321, %v335
  %340 = vrot.lane.b32.xlu0 %v336, 1
  %v341 = vpop.permute.xlu0 %340
  %342 = vrot.lane.b32.xlu0 %v337, 1
  %v343 = vpop.permute.xlu0 %342
  %v346 = vsub.f32 %v34, %v341
  %v347 = vsub.f32 %v35, %v343
  %349 = vset.pattern.permute.xlu0 1
  %350 = vperm.xlu0 %349, %v334
  %v351 = vpop.permute.xlu0 %350
  %354 = vset.pattern.permute.xlu0 1
  %355 = vperm.xlu0 %354, %v335
  %v356 = vpop.permute.xlu0 %355
  %v358 = vmul.f32 %v32, %v351
  %v359 = vmul.f32 %v33, %v356
  %360 = vrot.lane.b32.xlu0 %v334, 127
  %v361 = vpop.permute.xlu0 %360
  %362 = vrot.lane.b32.xlu0 %v335, 127
  %v363 = vpop.permute.xlu0 %362
  %v366 = vmul.f32 %v34, %v361
  %v367 = vmul.f32 %v35, %v363
  %370 = vrot.lane.b32.xlu0 %v346, 126
  %v371 = vpop.permute.xlu0 %370
  %372 = vrot.lane.b32.xlu0 %v347, 126
  %v373 = vpop.permute.xlu0 %372
  %v376 = vadd.f32 %v366, %v371
  %v377 = vadd.f32 %v367, %v373
  %v378 = vld [vmem:[%s1] sm:$0x1f]
  %380 = vset.pattern.permute.xlu0 0
  %381 = vperm.xlu0 %380, %v358
  %v382 = vpop.permute.xlu0 %381
  %385 = vset.pattern.permute.xlu0 0
  %386 = vperm.xlu0 %385, %v359
  %v387 = vpop.permute.xlu0 %386
  %v389 = vlaneseq
  %v390 = vshrl.u32 %v389, 7
  %v391 = vsub.s32 0, %v390
  %v392 = vrot.slane %v378, %v391
  %v393 = vmul.f32 %v382, %v392
  %v394 = vmul.f32 %v387, %v392
  %395 = vset.pattern.permute.xlu0 1
  %396 = vperm.xlu0 %395, %v358
  %v397 = vpop.permute.xlu0 %396
  %399 = vset.pattern.permute.xlu0 1
  %400 = vperm.xlu0 %399, %v359
  %v401 = vpop.permute.xlu0 %400
  %v403 = vlaneseq
  %v404 = vshrl.u32 %v403, 7
  %v405 = vsub.s32 1, %v404
  %v406 = vrot.slane %v378, %v405
  %v407 = vmul.f32 %v397, %v406
  %v408 = vmul.f32 %v401, %v406
  %v409 = vadd.f32 %v393, %v407
  %v410 = vadd.f32 %v394, %v408
  %411 = vset.pattern.permute.xlu0 2
  %412 = vperm.xlu0 %411, %v358
  %v413 = vpop.permute.xlu0 %412
  %415 = vset.pattern.permute.xlu0 2
  %416 = vperm.xlu0 %415, %v359
  %v417 = vpop.permute.xlu0 %416
  %v419 = vlaneseq
  %v420 = vshrl.u32 %v419, 7
  %v421 = vsub.s32 2, %v420
  %v422 = vrot.slane %v378, %v421
  %v423 = vmul.f32 %v413, %v422
  %v424 = vmul.f32 %v417, %v422
  %v425 = vadd.f32 %v409, %v423
  %v426 = vadd.f32 %v410, %v424
  %427 = vset.pattern.permute.xlu0 3
  %428 = vperm.xlu0 %427, %v358
  %v429 = vpop.permute.xlu0 %428
  %431 = vset.pattern.permute.xlu0 3
  %432 = vperm.xlu0 %431, %v359
  %v433 = vpop.permute.xlu0 %432
  %v435 = vlaneseq
  %v436 = vshrl.u32 %v435, 7
  %v437 = vsub.s32 3, %v436
  %v438 = vrot.slane %v378, %v437
  %v439 = vmul.f32 %v429, %v438
  %v440 = vmul.f32 %v433, %v438
  %v441 = vadd.f32 %v425, %v439
  %v442 = vadd.f32 %v426, %v440
  %444 = vset.pattern.permute.xlu0 0
  %445 = vperm.xlu0 %444, %v376
  %v446 = vpop.permute.xlu0 %445
  %449 = vset.pattern.permute.xlu0 0
  %450 = vperm.xlu0 %449, %v377
  %v451 = vpop.permute.xlu0 %450
  %v453 = vadd.f32 %v441, %v446
  %v454 = vadd.f32 %v442, %v451
  %vm455 = vcmp.ge.f32.partialorder %v453, 0.0
  %vm456 = vcmp.ge.f32.partialorder %v454, 0.0
  %v457 = vmul.f32 %v453, 0.3
  %v458 = vmul.f32 %v454, 0.3
  %v459 = vsel %vm455, %v453, %v457
  %v460 = vsel %vm456, %v454, %v458
  %v461 = vlaneseq
  %v462 = vshrl.u32 %v461, 7
  %v463 = vsub.s32 4, %v462
  %v464 = vrot.slane %v378, %v463
  %v465 = vmul.f32 %v459, %v464
  %v466 = vmul.f32 %v460, %v464
  %467 = vset.pattern.permute.xlu0 7
  %468 = vperm.xlu0 %467, %v34
  %v469 = vpop.permute.xlu0 %468
  %471 = vset.pattern.permute.xlu0 7
  %472 = vperm.xlu0 %471, %v35
  %v473 = vpop.permute.xlu0 %472
  %v475 = vmul.f32 %v469, %v465
  %v476 = vmul.f32 %v473, %v466
  %s477 = scalar_lea.vmem %s1, 8
  %v478 = vld [vmem:[%s477] sm:$0x1f]
  %v479 = vlaneseq
  %v480 = vshrl.u32 %v479, 7
  %v481 = vsub.s32 0, %v480
  %v482 = vrot.slane %v478, %v481
  %v483 = vmul.f32 %v382, %v482
  %v484 = vmul.f32 %v387, %v482
  %v485 = vlaneseq
  %v486 = vshrl.u32 %v485, 7
  %v487 = vsub.s32 1, %v486
  %v488 = vrot.slane %v478, %v487
  %v489 = vmul.f32 %v397, %v488
  %v490 = vmul.f32 %v401, %v488
  %v491 = vadd.f32 %v483, %v489
  %v492 = vadd.f32 %v484, %v490
  %v493 = vlaneseq
  %v494 = vshrl.u32 %v493, 7
  %v495 = vsub.s32 2, %v494
  %v496 = vrot.slane %v478, %v495
  %v497 = vmul.f32 %v413, %v496
  %v498 = vmul.f32 %v417, %v496
  %v499 = vadd.f32 %v491, %v497
  %v500 = vadd.f32 %v492, %v498
  %v501 = vlaneseq
  %v502 = vshrl.u32 %v501, 7
  %v503 = vsub.s32 3, %v502
  %v504 = vrot.slane %v478, %v503
  %v505 = vmul.f32 %v429, %v504
  %v506 = vmul.f32 %v433, %v504
  %v507 = vadd.f32 %v499, %v505
  %v508 = vadd.f32 %v500, %v506
  %v509 = vadd.f32 %v507, %v446
  %v510 = vadd.f32 %v508, %v451
  %vm511 = vcmp.ge.f32.partialorder %v509, 0.0
  %vm512 = vcmp.ge.f32.partialorder %v510, 0.0
  %v513 = vmul.f32 %v509, 0.3
  %v514 = vmul.f32 %v510, 0.3
  %v515 = vsel %vm511, %v509, %v513
  %v516 = vsel %vm512, %v510, %v514
  %v517 = vlaneseq
  %v518 = vshrl.u32 %v517, 7
  %v519 = vsub.s32 4, %v518
  %v520 = vrot.slane %v478, %v519
  %v521 = vmul.f32 %v515, %v520
  %v522 = vmul.f32 %v516, %v520
  %523 = vset.pattern.permute.xlu0 8
  %524 = vperm.xlu0 %523, %v34
  %v525 = vpop.permute.xlu0 %524
  %527 = vset.pattern.permute.xlu0 8
  %528 = vperm.xlu0 %527, %v35
  %v529 = vpop.permute.xlu0 %528
  %v531 = vmul.f32 %v525, %v521
  %v532 = vmul.f32 %v529, %v522
  %v533 = vadd.f32 %v475, %v531
  %v534 = vadd.f32 %v476, %v532
  %s535 = scalar_lea.vmem %s1, 16
  %v536 = vld [vmem:[%s535] sm:$0x1f]
  %v537 = vlaneseq
  %v538 = vshrl.u32 %v537, 7
  %v539 = vsub.s32 0, %v538
  %v540 = vrot.slane %v536, %v539
  %v541 = vmul.f32 %v382, %v540
  %v542 = vmul.f32 %v387, %v540
  %v543 = vlaneseq
  %v544 = vshrl.u32 %v543, 7
  %v545 = vsub.s32 1, %v544
  %v546 = vrot.slane %v536, %v545
  %v547 = vmul.f32 %v397, %v546
  %v548 = vmul.f32 %v401, %v546
  %v549 = vadd.f32 %v541, %v547
  %v550 = vadd.f32 %v542, %v548
  %v551 = vlaneseq
  %v552 = vshrl.u32 %v551, 7
  %v553 = vsub.s32 2, %v552
  %v554 = vrot.slane %v536, %v553
  %v555 = vmul.f32 %v413, %v554
  %v556 = vmul.f32 %v417, %v554
  %v557 = vadd.f32 %v549, %v555
  %v558 = vadd.f32 %v550, %v556
  %v559 = vlaneseq
  %v560 = vshrl.u32 %v559, 7
  %v561 = vsub.s32 3, %v560
  %v562 = vrot.slane %v536, %v561
  %v563 = vmul.f32 %v429, %v562
  %v564 = vmul.f32 %v433, %v562
  %v565 = vadd.f32 %v557, %v563
  %v566 = vadd.f32 %v558, %v564
  %v567 = vadd.f32 %v565, %v446
  %v568 = vadd.f32 %v566, %v451
  %vm569 = vcmp.ge.f32.partialorder %v567, 0.0
  %vm570 = vcmp.ge.f32.partialorder %v568, 0.0
  %v571 = vmul.f32 %v567, 0.3
  %v572 = vmul.f32 %v568, 0.3
  %v573 = vsel %vm569, %v567, %v571
  %v574 = vsel %vm570, %v568, %v572
  %v575 = vlaneseq
  %v576 = vshrl.u32 %v575, 7
  %v577 = vsub.s32 4, %v576
  %v578 = vrot.slane %v536, %v577
  %v579 = vmul.f32 %v573, %v578
  %v580 = vmul.f32 %v574, %v578
  %581 = vset.pattern.permute.xlu0 9
  %582 = vperm.xlu0 %581, %v34
  %v583 = vpop.permute.xlu0 %582
  %585 = vset.pattern.permute.xlu0 9
  %586 = vperm.xlu0 %585, %v35
  %v587 = vpop.permute.xlu0 %586
  %v589 = vmul.f32 %v583, %v579
  %v590 = vmul.f32 %v587, %v580
  %v591 = vadd.f32 %v533, %v589
  %v592 = vadd.f32 %v534, %v590
  %s593 = scalar_lea.vmem %s1, 24
  %v594 = vld [vmem:[%s593] sm:$0x1f]
  %v595 = vlaneseq
  %v596 = vshrl.u32 %v595, 7
  %v597 = vsub.s32 0, %v596
  %v598 = vrot.slane %v594, %v597
  %v599 = vmul.f32 %v382, %v598
  %v600 = vmul.f32 %v387, %v598
  %v601 = vlaneseq
  %v602 = vshrl.u32 %v601, 7
  %v603 = vsub.s32 1, %v602
  %v604 = vrot.slane %v594, %v603
  %v605 = vmul.f32 %v397, %v604
  %v606 = vmul.f32 %v401, %v604
  %v607 = vadd.f32 %v599, %v605
  %v608 = vadd.f32 %v600, %v606
  %v609 = vlaneseq
  %v610 = vshrl.u32 %v609, 7
  %v611 = vsub.s32 2, %v610
  %v612 = vrot.slane %v594, %v611
  %v613 = vmul.f32 %v413, %v612
  %v614 = vmul.f32 %v417, %v612
  %v615 = vadd.f32 %v607, %v613
  %v616 = vadd.f32 %v608, %v614
  %v617 = vlaneseq
  %v618 = vshrl.u32 %v617, 7
  %v619 = vsub.s32 3, %v618
  %v620 = vrot.slane %v594, %v619
  %v621 = vmul.f32 %v429, %v620
  %v622 = vmul.f32 %v433, %v620
  %v623 = vadd.f32 %v615, %v621
  %v624 = vadd.f32 %v616, %v622
  %v625 = vadd.f32 %v623, %v446
  %v626 = vadd.f32 %v624, %v451
  %vm627 = vcmp.ge.f32.partialorder %v625, 0.0
  %vm628 = vcmp.ge.f32.partialorder %v626, 0.0
  %v629 = vmul.f32 %v625, 0.3
  %v630 = vmul.f32 %v626, 0.3
  %v631 = vsel %vm627, %v625, %v629
  %v632 = vsel %vm628, %v626, %v630
  %v633 = vlaneseq
  %v634 = vshrl.u32 %v633, 7
  %v635 = vsub.s32 4, %v634
  %v636 = vrot.slane %v594, %v635
  %v637 = vmul.f32 %v631, %v636
  %v638 = vmul.f32 %v632, %v636
  %639 = vset.pattern.permute.xlu0 10
  %640 = vperm.xlu0 %639, %v34
  %v641 = vpop.permute.xlu0 %640
  %643 = vset.pattern.permute.xlu0 10
  %644 = vperm.xlu0 %643, %v35
  %v645 = vpop.permute.xlu0 %644
  %v647 = vmul.f32 %v641, %v637
  %v648 = vmul.f32 %v645, %v638
  %v649 = vadd.f32 %v591, %v647
  %v650 = vadd.f32 %v592, %v648
  %s651 = scalar_lea.vmem %s1, 32
  %v652 = vld [vmem:[%s651] sm:$0x1f]
  %v653 = vlaneseq
  %v654 = vshrl.u32 %v653, 7
  %v655 = vsub.s32 0, %v654
  %v656 = vrot.slane %v652, %v655
  %v657 = vmul.f32 %v382, %v656
  %v658 = vmul.f32 %v387, %v656
  %v659 = vlaneseq
  %v660 = vshrl.u32 %v659, 7
  %v661 = vsub.s32 1, %v660
  %v662 = vrot.slane %v652, %v661
  %v663 = vmul.f32 %v397, %v662
  %v664 = vmul.f32 %v401, %v662
  %v665 = vadd.f32 %v657, %v663
  %v666 = vadd.f32 %v658, %v664
  %v667 = vlaneseq
  %v668 = vshrl.u32 %v667, 7
  %v669 = vsub.s32 2, %v668
  %v670 = vrot.slane %v652, %v669
  %v671 = vmul.f32 %v413, %v670
  %v672 = vmul.f32 %v417, %v670
  %v673 = vadd.f32 %v665, %v671
  %v674 = vadd.f32 %v666, %v672
  %v675 = vlaneseq
  %v676 = vshrl.u32 %v675, 7
  %v677 = vsub.s32 3, %v676
  %v678 = vrot.slane %v652, %v677
  %v679 = vmul.f32 %v429, %v678
  %v680 = vmul.f32 %v433, %v678
  %v681 = vadd.f32 %v673, %v679
  %v682 = vadd.f32 %v674, %v680
  %v683 = vadd.f32 %v681, %v446
  %v684 = vadd.f32 %v682, %v451
  %vm685 = vcmp.ge.f32.partialorder %v683, 0.0
  %vm686 = vcmp.ge.f32.partialorder %v684, 0.0
  %v687 = vmul.f32 %v683, 0.3
  %v688 = vmul.f32 %v684, 0.3
  %v689 = vsel %vm685, %v683, %v687
  %v690 = vsel %vm686, %v684, %v688
  %v691 = vlaneseq
  %v692 = vshrl.u32 %v691, 7
  %v693 = vsub.s32 4, %v692
  %v694 = vrot.slane %v652, %v693
  %v695 = vmul.f32 %v689, %v694
  %v696 = vmul.f32 %v690, %v694
  %697 = vset.pattern.permute.xlu0 11
  %698 = vperm.xlu0 %697, %v34
  %v699 = vpop.permute.xlu0 %698
  %701 = vset.pattern.permute.xlu0 11
  %702 = vperm.xlu0 %701, %v35
  %v703 = vpop.permute.xlu0 %702
  %v705 = vmul.f32 %v699, %v695
  %v706 = vmul.f32 %v703, %v696
  %v707 = vadd.f32 %v649, %v705
  %v708 = vadd.f32 %v650, %v706
  %s709 = scalar_lea.vmem %s1, 40
  %v710 = vld [vmem:[%s709] sm:$0x1f]
  %v711 = vlaneseq
  %v712 = vshrl.u32 %v711, 7
  %v713 = vsub.s32 0, %v712
  %v714 = vrot.slane %v710, %v713
  %v715 = vmul.f32 %v382, %v714
  %v716 = vmul.f32 %v387, %v714
  %v717 = vlaneseq
  %v718 = vshrl.u32 %v717, 7
  %v719 = vsub.s32 1, %v718
  %v720 = vrot.slane %v710, %v719
  %v721 = vmul.f32 %v397, %v720
  %v722 = vmul.f32 %v401, %v720
  %v723 = vadd.f32 %v715, %v721
  %v724 = vadd.f32 %v716, %v722
  %v725 = vlaneseq
  %v726 = vshrl.u32 %v725, 7
  %v727 = vsub.s32 2, %v726
  %v728 = vrot.slane %v710, %v727
  %v729 = vmul.f32 %v413, %v728
  %v730 = vmul.f32 %v417, %v728
  %v731 = vadd.f32 %v723, %v729
  %v732 = vadd.f32 %v724, %v730
  %v733 = vlaneseq
  %v734 = vshrl.u32 %v733, 7
  %v735 = vsub.s32 3, %v734
  %v736 = vrot.slane %v710, %v735
  %v737 = vmul.f32 %v429, %v736
  %v738 = vmul.f32 %v433, %v736
  %v739 = vadd.f32 %v731, %v737
  %v740 = vadd.f32 %v732, %v738
  %v741 = vadd.f32 %v739, %v446
  %v742 = vadd.f32 %v740, %v451
  %vm743 = vcmp.ge.f32.partialorder %v741, 0.0
  %vm744 = vcmp.ge.f32.partialorder %v742, 0.0
  %v745 = vmul.f32 %v741, 0.3
  %v746 = vmul.f32 %v742, 0.3
  %v747 = vsel %vm743, %v741, %v745
  %v748 = vsel %vm744, %v742, %v746
  %v749 = vlaneseq
  %v750 = vshrl.u32 %v749, 7
  %v751 = vsub.s32 4, %v750
  %v752 = vrot.slane %v710, %v751
  %v753 = vmul.f32 %v747, %v752
  %v754 = vmul.f32 %v748, %v752
  %755 = vset.pattern.permute.xlu0 12
  %756 = vperm.xlu0 %755, %v34
  %v757 = vpop.permute.xlu0 %756
  %759 = vset.pattern.permute.xlu0 12
  %760 = vperm.xlu0 %759, %v35
  %v761 = vpop.permute.xlu0 %760
  %v763 = vmul.f32 %v757, %v753
  %v764 = vmul.f32 %v761, %v754
  %v765 = vadd.f32 %v707, %v763
  %v766 = vadd.f32 %v708, %v764
  %s767 = scalar_lea.vmem %s1, 48
  %v768 = vld [vmem:[%s767] sm:$0x1f]
  %v769 = vlaneseq
  %v770 = vshrl.u32 %v769, 7
  %v771 = vsub.s32 0, %v770
  %v772 = vrot.slane %v768, %v771
  %v773 = vmul.f32 %v382, %v772
  %v774 = vmul.f32 %v387, %v772
  %v775 = vlaneseq
  %v776 = vshrl.u32 %v775, 7
  %v777 = vsub.s32 1, %v776
  %v778 = vrot.slane %v768, %v777
  %v779 = vmul.f32 %v397, %v778
  %v780 = vmul.f32 %v401, %v778
  %v781 = vadd.f32 %v773, %v779
  %v782 = vadd.f32 %v774, %v780
  %v783 = vlaneseq
  %v784 = vshrl.u32 %v783, 7
  %v785 = vsub.s32 2, %v784
  %v786 = vrot.slane %v768, %v785
  %v787 = vmul.f32 %v413, %v786
  %v788 = vmul.f32 %v417, %v786
  %v789 = vadd.f32 %v781, %v787
  %v790 = vadd.f32 %v782, %v788
  %v791 = vlaneseq
  %v792 = vshrl.u32 %v791, 7
  %v793 = vsub.s32 3, %v792
  %v794 = vrot.slane %v768, %v793
  %v795 = vmul.f32 %v429, %v794
  %v796 = vmul.f32 %v433, %v794
  %v797 = vadd.f32 %v789, %v795
  %v798 = vadd.f32 %v790, %v796
  %v799 = vadd.f32 %v797, %v446
  %v800 = vadd.f32 %v798, %v451
  %vm801 = vcmp.ge.f32.partialorder %v799, 0.0
  %vm802 = vcmp.ge.f32.partialorder %v800, 0.0
  %v803 = vmul.f32 %v799, 0.3
  %v804 = vmul.f32 %v800, 0.3
  %v805 = vsel %vm801, %v799, %v803
  %v806 = vsel %vm802, %v800, %v804
  %v807 = vlaneseq
  %v808 = vshrl.u32 %v807, 7
  %v809 = vsub.s32 4, %v808
  %v810 = vrot.slane %v768, %v809
  %v811 = vmul.f32 %v805, %v810
  %v812 = vmul.f32 %v806, %v810
  %813 = vset.pattern.permute.xlu0 13
  %814 = vperm.xlu0 %813, %v34
  %v815 = vpop.permute.xlu0 %814
  %817 = vset.pattern.permute.xlu0 13
  %818 = vperm.xlu0 %817, %v35
  %v819 = vpop.permute.xlu0 %818
  %v821 = vmul.f32 %v815, %v811
  %v822 = vmul.f32 %v819, %v812
  %v823 = vadd.f32 %v765, %v821
  %v824 = vadd.f32 %v766, %v822
  %s825 = scalar_lea.vmem %s1, 56
  %v826 = vld [vmem:[%s825] sm:$0x1f]
  %v827 = vlaneseq
  %v828 = vshrl.u32 %v827, 7
  %v829 = vsub.s32 0, %v828
  %v830 = vrot.slane %v826, %v829
  %v831 = vmul.f32 %v382, %v830
  %v832 = vmul.f32 %v387, %v830
  %v833 = vlaneseq
  %v834 = vshrl.u32 %v833, 7
  %v835 = vsub.s32 1, %v834
  %v836 = vrot.slane %v826, %v835
  %v837 = vmul.f32 %v397, %v836
  %v838 = vmul.f32 %v401, %v836
  %v839 = vadd.f32 %v831, %v837
  %v840 = vadd.f32 %v832, %v838
  %v841 = vlaneseq
  %v842 = vshrl.u32 %v841, 7
  %v843 = vsub.s32 2, %v842
  %v844 = vrot.slane %v826, %v843
  %v845 = vmul.f32 %v413, %v844
  %v846 = vmul.f32 %v417, %v844
  %v847 = vadd.f32 %v839, %v845
  %v848 = vadd.f32 %v840, %v846
  %v849 = vlaneseq
  %v850 = vshrl.u32 %v849, 7
  %v851 = vsub.s32 3, %v850
  %v852 = vrot.slane %v826, %v851
  %v853 = vmul.f32 %v429, %v852
  %v854 = vmul.f32 %v433, %v852
  %v855 = vadd.f32 %v847, %v853
  %v856 = vadd.f32 %v848, %v854
  %v857 = vadd.f32 %v855, %v446
  %v858 = vadd.f32 %v856, %v451
  %vm859 = vcmp.ge.f32.partialorder %v857, 0.0
  %vm860 = vcmp.ge.f32.partialorder %v858, 0.0
  %v861 = vmul.f32 %v857, 0.3
  %v862 = vmul.f32 %v858, 0.3
  %v863 = vsel %vm859, %v857, %v861
  %v864 = vsel %vm860, %v858, %v862
  %v865 = vlaneseq
  %v866 = vshrl.u32 %v865, 7
  %v867 = vsub.s32 4, %v866
  %v868 = vrot.slane %v826, %v867
  %v869 = vmul.f32 %v863, %v868
  %v870 = vmul.f32 %v864, %v868
  %871 = vset.pattern.permute.xlu0 14
  %872 = vperm.xlu0 %871, %v34
  %v873 = vpop.permute.xlu0 %872
  %875 = vset.pattern.permute.xlu0 14
  %876 = vperm.xlu0 %875, %v35
  %v877 = vpop.permute.xlu0 %876
  %v879 = vmul.f32 %v873, %v869
  %v880 = vmul.f32 %v877, %v870
  %v881 = vadd.f32 %v823, %v879
  %v882 = vadd.f32 %v824, %v880
  %s883 = scalar_lea.vmem %s1, 64
  %v884 = vld [vmem:[%s883] sm:$0x1f]
  %v885 = vlaneseq
  %v886 = vshrl.u32 %v885, 7
  %v887 = vsub.s32 0, %v886
  %v888 = vrot.slane %v884, %v887
  %v889 = vmul.f32 %v382, %v888
  %v890 = vmul.f32 %v387, %v888
  %v891 = vlaneseq
  %v892 = vshrl.u32 %v891, 7
  %v893 = vsub.s32 1, %v892
  %v894 = vrot.slane %v884, %v893
  %v895 = vmul.f32 %v397, %v894
  %v896 = vmul.f32 %v401, %v894
  %v897 = vadd.f32 %v889, %v895
  %v898 = vadd.f32 %v890, %v896
  %v899 = vlaneseq
  %v900 = vshrl.u32 %v899, 7
  %v901 = vsub.s32 2, %v900
  %v902 = vrot.slane %v884, %v901
  %v903 = vmul.f32 %v413, %v902
  %v904 = vmul.f32 %v417, %v902
  %v905 = vadd.f32 %v897, %v903
  %v906 = vadd.f32 %v898, %v904
  %v907 = vlaneseq
  %v908 = vshrl.u32 %v907, 7
  %v909 = vsub.s32 3, %v908
  %v910 = vrot.slane %v884, %v909
  %v911 = vmul.f32 %v429, %v910
  %v912 = vmul.f32 %v433, %v910
  %v913 = vadd.f32 %v905, %v911
  %v914 = vadd.f32 %v906, %v912
  %v915 = vadd.f32 %v913, %v446
  %v916 = vadd.f32 %v914, %v451
  %vm917 = vcmp.ge.f32.partialorder %v915, 0.0
  %vm918 = vcmp.ge.f32.partialorder %v916, 0.0
  %v919 = vmul.f32 %v915, 0.3
  %v920 = vmul.f32 %v916, 0.3
  %v921 = vsel %vm917, %v915, %v919
  %v922 = vsel %vm918, %v916, %v920
  %v923 = vlaneseq
  %v924 = vshrl.u32 %v923, 7
  %v925 = vsub.s32 4, %v924
  %v926 = vrot.slane %v884, %v925
  %v927 = vmul.f32 %v921, %v926
  %v928 = vmul.f32 %v922, %v926
  %929 = vset.pattern.permute.xlu0 15
  %930 = vperm.xlu0 %929, %v34
  %v931 = vpop.permute.xlu0 %930
  %933 = vset.pattern.permute.xlu0 15
  %934 = vperm.xlu0 %933, %v35
  %v935 = vpop.permute.xlu0 %934
  %v937 = vmul.f32 %v931, %v927
  %v938 = vmul.f32 %v935, %v928
  %v939 = vadd.f32 %v881, %v937
  %v940 = vadd.f32 %v882, %v938
  %941 = vset.pattern.permute.xlu0 3
  %942 = vperm.xlu0 %941, %v34
  %v943 = vpop.permute.xlu0 %942
  %945 = vset.pattern.permute.xlu0 3
  %946 = vperm.xlu0 %945, %v35
  %v947 = vpop.permute.xlu0 %946
  %v949 = vadd.f32 %v939, %v943
  %v950 = vadd.f32 %v940, %v947
  %951 = vadd.xlane.f32.xlu0 %v949
  %v952 = vpop.xlane.xlu0 %951
  %953 = vadd.xlane.f32.xlu0 %v950
  %v954 = vpop.xlane.xlu0 %953
  %v955 = vmul.f32 %v949, %v949
  %v956 = vmul.f32 %v950, %v950
  %957 = vadd.xlane.f32.xlu0 %v955
  %v958 = vpop.xlane.xlu0 %957
  %959 = vadd.xlane.f32.xlu0 %v956
  %v960 = vpop.xlane.xlu0 %959
  %v961 = vmul.f32 %v952, 0.0078125
  %v962 = vmul.f32 %v954, 0.0078125
  %v963 = vmul.f32 %v958, 0.0078125
  %v964 = vmul.f32 %v960, 0.0078125
  %v965 = vmul.f32 %v961, %v961
  %v966 = vmul.f32 %v962, %v962
  %v967 = vsub.f32 %v963, %v965
  %v968 = vsub.f32 %v964, %v966
  %v969 = vmax.f32 %v967, 0.0
  %v970 = vmax.f32 %v968, 0.0
  %v971 = vadd.f32 %v969, 0.001
  %v972 = vadd.f32 %v970, 0.001
  %v973 = vrsqrt.pop %v971
  %v974 = vrsqrt.pop %v972
  %v975 = vmul.f32 %v973, %v34
  %v976 = vmul.f32 %v974, %v35
  %v977 = vmul.f32 %v961, %v975
  %v978 = vmul.f32 %v962, %v976
  %981 = vrot.lane.b32.xlu0 %v977, 1
  %v982 = vpop.permute.xlu0 %981
  %983 = vrot.lane.b32.xlu0 %v978, 1
  %v984 = vpop.permute.xlu0 %983
  %v987 = vsub.f32 %v34, %v982
  %v988 = vsub.f32 %v35, %v984
  %990 = vset.pattern.permute.xlu0 4
  %991 = vperm.xlu0 %990, %v975
  %v992 = vpop.permute.xlu0 %991
  %995 = vset.pattern.permute.xlu0 4
  %996 = vperm.xlu0 %995, %v976
  %v997 = vpop.permute.xlu0 %996
  %v999 = vmul.f32 %v949, %v992
  %v1000 = vmul.f32 %v950, %v997
  %1002 = vset.pattern.permute.xlu0 5
  %1003 = vperm.xlu0 %1002, %v987
  %v1004 = vpop.permute.xlu0 %1003
  %1007 = vset.pattern.permute.xlu0 5
  %1008 = vperm.xlu0 %1007, %v988
  %v1009 = vpop.permute.xlu0 %1008
  %v1011 = vadd.f32 %v999, %v1004
  %v1012 = vadd.f32 %v1000, %v1009
  %vm1013 = vcmp.ge.f32.partialorder %v1011, 0.0
  %vm1014 = vcmp.ge.f32.partialorder %v1012, 0.0
  %v1015 = vmul.f32 %v1011, 0.3
  %v1016 = vmul.f32 %v1012, 0.3
  %v1017 = vsel %vm1013, %v1011, %v1015
  %v1018 = vsel %vm1014, %v1012, %v1016
  %v1019 = vld [vmem:[%s4] sm:$0xf]
  %v1020 = vld [vmem:[%s5] sm:$0xf]
  %v1021 = vld [vmem:[%s6] sm:$0xff]
  %v1022 = vld [vmem:[%s6 + $0x8] sm:$0xff]
  %vm1023 = vcmask 523264
  %v1024 = vsel %vm1023, %v1017, 0.0
  %1025 = vadd.xlane.f32.xlu0 %v1024
  %v1026 = vpop.xlane.xlu0 %1025
  %v1027 = vsel %vm1023, %v1018, 0.0
  %1028 = vadd.xlane.f32.xlu0 %v1027
  %v1029 = vpop.xlane.xlu0 %1028
  %v1030 = vmul.f32 %v1026, 0.015625
  %v1031 = vmul.f32 %v1029, 0.015625
  %v1032 = vlaneseq
  %v1033 = vshrl.u32 %v1032, 7
  %v1034 = vsub.s32 0, %v1033
  %v1035 = vrot.slane %v1030, %v1034
  %v1036 = vmul.f32 %v1019, %v1035
  %v1037 = vlaneseq
  %v1038 = vshrl.u32 %v1037, 7
  %v1039 = vsub.s32 1, %v1038
  %v1040 = vrot.slane %v1030, %v1039
  %v1041 = vmul.f32 %v1019, %v1040
  %1043 = vrot.lane.b32.xlu0 %v1041, 127
  %v1044 = vpop.permute.xlu0 %1043
  %v1046 = vadd.f32 %v1036, %v1044
  %v1047 = vlaneseq
  %v1048 = vshrl.u32 %v1047, 7
  %v1049 = vsub.s32 2, %v1048
  %v1050 = vrot.slane %v1030, %v1049
  %v1051 = vmul.f32 %v1019, %v1050
  %1053 = vrot.lane.b32.xlu0 %v1051, 126
  %v1054 = vpop.permute.xlu0 %1053
  %v1056 = vadd.f32 %v1046, %v1054
  %v1057 = vlaneseq
  %v1058 = vshrl.u32 %v1057, 7
  %v1059 = vsub.s32 3, %v1058
  %v1060 = vrot.slane %v1030, %v1059
  %v1061 = vmul.f32 %v1019, %v1060
  %1063 = vrot.lane.b32.xlu0 %v1061, 125
  %v1064 = vpop.permute.xlu0 %1063
  %v1066 = vadd.f32 %v1056, %v1064
  %v1067 = vlaneseq
  %v1068 = vshrl.u32 %v1067, 7
  %v1069 = vsub.s32 4, %v1068
  %v1070 = vrot.slane %v1030, %v1069
  %v1071 = vmul.f32 %v1019, %v1070
  %1073 = vrot.lane.b32.xlu0 %v1071, 124
  %v1074 = vpop.permute.xlu0 %1073
  %v1076 = vadd.f32 %v1066, %v1074
  %v1077 = vlaneseq
  %v1078 = vshrl.u32 %v1077, 7
  %v1079 = vsub.s32 5, %v1078
  %v1080 = vrot.slane %v1030, %v1079
  %v1081 = vmul.f32 %v1019, %v1080
  %1083 = vrot.lane.b32.xlu0 %v1081, 123
  %v1084 = vpop.permute.xlu0 %1083
  %v1086 = vadd.f32 %v1076, %v1084
  %v1087 = vlaneseq
  %v1088 = vshrl.u32 %v1087, 7
  %v1089 = vsub.s32 6, %v1088
  %v1090 = vrot.slane %v1030, %v1089
  %v1091 = vmul.f32 %v1019, %v1090
  %1093 = vrot.lane.b32.xlu0 %v1091, 122
  %v1094 = vpop.permute.xlu0 %1093
  %v1096 = vadd.f32 %v1086, %v1094
  %v1097 = vlaneseq
  %v1098 = vshrl.u32 %v1097, 7
  %v1099 = vsub.s32 7, %v1098
  %v1100 = vrot.slane %v1030, %v1099
  %v1101 = vmul.f32 %v1019, %v1100
  %1103 = vrot.lane.b32.xlu0 %v1101, 121
  %v1104 = vpop.permute.xlu0 %1103
  %v1106 = vadd.f32 %v1096, %v1104
  %v1107 = vlaneseq
  %v1108 = vshrl.u32 %v1107, 7
  %v1109 = vsub.s32 0, %v1108
  %v1110 = vrot.slane %v1031, %v1109
  %v1111 = vmul.f32 %v1019, %v1110
  %1113 = vrot.lane.b32.xlu0 %v1111, 120
  %v1114 = vpop.permute.xlu0 %1113
  %v1116 = vadd.f32 %v1106, %v1114
  %v1117 = vlaneseq
  %v1118 = vshrl.u32 %v1117, 7
  %v1119 = vsub.s32 1, %v1118
  %v1120 = vrot.slane %v1031, %v1119
  %v1121 = vmul.f32 %v1019, %v1120
  %1123 = vrot.lane.b32.xlu0 %v1121, 119
  %v1124 = vpop.permute.xlu0 %1123
  %v1126 = vadd.f32 %v1116, %v1124
  %v1127 = vlaneseq
  %v1128 = vshrl.u32 %v1127, 7
  %v1129 = vsub.s32 2, %v1128
  %v1130 = vrot.slane %v1031, %v1129
  %v1131 = vmul.f32 %v1019, %v1130
  %1133 = vrot.lane.b32.xlu0 %v1131, 118
  %v1134 = vpop.permute.xlu0 %1133
  %v1136 = vadd.f32 %v1126, %v1134
  %v1137 = vlaneseq
  %v1138 = vshrl.u32 %v1137, 7
  %v1139 = vsub.s32 3, %v1138
  %v1140 = vrot.slane %v1031, %v1139
  %v1141 = vmul.f32 %v1019, %v1140
  %1143 = vrot.lane.b32.xlu0 %v1141, 117
  %v1144 = vpop.permute.xlu0 %1143
  %v1146 = vadd.f32 %v1136, %v1144
  %v1147 = vlaneseq
  %v1148 = vshrl.u32 %v1147, 7
  %v1149 = vsub.s32 4, %v1148
  %v1150 = vrot.slane %v1031, %v1149
  %v1151 = vmul.f32 %v1019, %v1150
  %1153 = vrot.lane.b32.xlu0 %v1151, 116
  %v1154 = vpop.permute.xlu0 %1153
  %v1156 = vadd.f32 %v1146, %v1154
  %v1157 = vlaneseq
  %v1158 = vshrl.u32 %v1157, 7
  %v1159 = vsub.s32 5, %v1158
  %v1160 = vrot.slane %v1031, %v1159
  %v1161 = vmul.f32 %v1019, %v1160
  %1163 = vrot.lane.b32.xlu0 %v1161, 115
  %v1164 = vpop.permute.xlu0 %1163
  %v1166 = vadd.f32 %v1156, %v1164
  %v1167 = vlaneseq
  %v1168 = vshrl.u32 %v1167, 7
  %v1169 = vsub.s32 6, %v1168
  %v1170 = vrot.slane %v1031, %v1169
  %v1171 = vmul.f32 %v1019, %v1170
  %1173 = vrot.lane.b32.xlu0 %v1171, 114
  %v1174 = vpop.permute.xlu0 %1173
  %v1176 = vadd.f32 %v1166, %v1174
  %v1177 = vlaneseq
  %v1178 = vshrl.u32 %v1177, 7
  %v1179 = vsub.s32 7, %v1178
  %v1180 = vrot.slane %v1031, %v1179
  %v1181 = vmul.f32 %v1019, %v1180
  %1183 = vrot.lane.b32.xlu0 %v1181, 113
  %v1184 = vpop.permute.xlu0 %1183
  %v1186 = vadd.f32 %v1176, %v1184
  %v1187 = vadd.f32 %v1186, %v1020
  %vm1188 = vcmp.ge.f32.partialorder %v1187, 0.0
  %v1189 = vmul.f32 %v1187, 0.3
  %v1190 = vsel %vm1188, %v1187, %v1189
  %v1191 = vlaneseq
  %v1192 = vshrl.u32 %v1191, 7
  %v1193 = vsub.s32 0, %v1192
  %v1194 = vrot.slane %v1190, %v1193
  %v1195 = vmul.f32 %v1021, %v1194
  %v1196 = vmul.f32 %v1022, %v1194
  %v1197 = vlaneseq
  %v1198 = vshrl.u32 %v1197, 7
  %v1199 = vsub.s32 1, %v1198
  %v1200 = vrot.slane %v1190, %v1199
  %1202 = vrot.lane.b32.xlu0 %v1200, 1
  %v1203 = vpop.permute.xlu0 %1202
  %v1205 = vmul.f32 %v1021, %v1203
  %v1206 = vmul.f32 %v1022, %v1203
  %1209 = vrot.lane.b32.xlu0 %v1205, 127
  %v1210 = vpop.permute.xlu0 %1209
  %1211 = vrot.lane.b32.xlu0 %v1206, 127
  %v1212 = vpop.permute.xlu0 %1211
  %v1215 = vadd.f32 %v1195, %v1210
  %v1216 = vadd.f32 %v1196, %v1212
  %v1217 = vlaneseq
  %v1218 = vshrl.u32 %v1217, 7
  %v1219 = vsub.s32 2, %v1218
  %v1220 = vrot.slane %v1190, %v1219
  %1222 = vrot.lane.b32.xlu0 %v1220, 2
  %v1223 = vpop.permute.xlu0 %1222
  %v1225 = vmul.f32 %v1021, %v1223
  %v1226 = vmul.f32 %v1022, %v1223
  %1229 = vrot.lane.b32.xlu0 %v1225, 126
  %v1230 = vpop.permute.xlu0 %1229
  %1231 = vrot.lane.b32.xlu0 %v1226, 126
  %v1232 = vpop.permute.xlu0 %1231
  %v1235 = vadd.f32 %v1215, %v1230
  %v1236 = vadd.f32 %v1216, %v1232
  %v1237 = vlaneseq
  %v1238 = vshrl.u32 %v1237, 7
  %v1239 = vsub.s32 3, %v1238
  %v1240 = vrot.slane %v1190, %v1239
  %1242 = vrot.lane.b32.xlu0 %v1240, 3
  %v1243 = vpop.permute.xlu0 %1242
  %v1245 = vmul.f32 %v1021, %v1243
  %v1246 = vmul.f32 %v1022, %v1243
  %1249 = vrot.lane.b32.xlu0 %v1245, 125
  %v1250 = vpop.permute.xlu0 %1249
  %1251 = vrot.lane.b32.xlu0 %v1246, 125
  %v1252 = vpop.permute.xlu0 %1251
  %v1255 = vadd.f32 %v1235, %v1250
  %v1256 = vadd.f32 %v1236, %v1252
  %1257 = vrot.lane.b32.xlu0 %v34, 122
  %v1258 = vpop.permute.xlu0 %1257
  %1259 = vrot.lane.b32.xlu0 %v35, 122
  %v1260 = vpop.permute.xlu0 %1259
  %v1263 = vadd.f32 %v1255, %v1258
  %v1264 = vadd.f32 %v1256, %v1260
  %v1265 = vxor.u32 %v1263, 2147483648
  %v1266 = vxor.u32 %v1264, 2147483648
  %v1267 = vmul.f32 %v1265, 1.442695
  %v1268 = vpow.pop %v1267
  %v1269 = vmul.f32 %v1266, 1.442695
  %v1270 = vpow.pop %v1269
  %v1271 = vadd.f32 %v1268, 1.0
  %v1272 = vadd.f32 %v1270, 1.0
  %v1273 = vrcp.pop %v1271
  %v1274 = vmul.f32 1.0, %v1273
  %v1275 = vrcp.pop %v1272
  %v1276 = vmul.f32 1.0, %v1275
  %1278 = vset.pattern.permute.xlu0 0
  %1279 = vperm.xlu0 %1278, %v1274
  %v1280 = vpop.permute.xlu0 %1279
  %1283 = vset.pattern.permute.xlu0 0
  %1284 = vperm.xlu0 %1283, %v1276
  %v1285 = vpop.permute.xlu0 %1284
  %v1287 = vmul.f32 %v1017, %v1280
  %v1288 = vmul.f32 %v1018, %v1285
  %1291 = vrot.lane.b32.xlu0 %v1017, 64
  %v1292 = vpop.permute.xlu0 %1291
  %1293 = vrot.lane.b32.xlu0 %v1018, 64
  %v1294 = vpop.permute.xlu0 %1293
  %v1297 = vsel %vm1023, %v1292, 0.0
  %1298 = vadd.xlane.f32.xlu0 %v1297
  %v1299 = vpop.xlane.xlu0 %1298
  %v1300 = vsel %vm1023, %v1294, 0.0
  %1301 = vadd.xlane.f32.xlu0 %v1300
  %v1302 = vpop.xlane.xlu0 %1301
  %v1303 = vmul.f32 %v1299, 0.015625
  %v1304 = vmul.f32 %v1302, 0.015625
  %v1305 = vlaneseq
  %v1306 = vshrl.u32 %v1305, 7
  %v1307 = vsub.s32 0, %v1306
  %v1308 = vrot.slane %v1303, %v1307
  %v1309 = vmul.f32 %v1019, %v1308
  %v1310 = vlaneseq
  %v1311 = vshrl.u32 %v1310, 7
  %v1312 = vsub.s32 1, %v1311
  %v1313 = vrot.slane %v1303, %v1312
  %v1314 = vmul.f32 %v1019, %v1313
  %1316 = vrot.lane.b32.xlu0 %v1314, 127
  %v1317 = vpop.permute.xlu0 %1316
  %v1319 = vadd.f32 %v1309, %v1317
  %v1320 = vlaneseq
  %v1321 = vshrl.u32 %v1320, 7
  %v1322 = vsub.s32 2, %v1321
  %v1323 = vrot.slane %v1303, %v1322
  %v1324 = vmul.f32 %v1019, %v1323
  %1326 = vrot.lane.b32.xlu0 %v1324, 126
  %v1327 = vpop.permute.xlu0 %1326
  %v1329 = vadd.f32 %v1319, %v1327
  %v1330 = vlaneseq
  %v1331 = vshrl.u32 %v1330, 7
  %v1332 = vsub.s32 3, %v1331
  %v1333 = vrot.slane %v1303, %v1332
  %v1334 = vmul.f32 %v1019, %v1333
  %1336 = vrot.lane.b32.xlu0 %v1334, 125
  %v1337 = vpop.permute.xlu0 %1336
  %v1339 = vadd.f32 %v1329, %v1337
  %v1340 = vlaneseq
  %v1341 = vshrl.u32 %v1340, 7
  %v1342 = vsub.s32 4, %v1341
  %v1343 = vrot.slane %v1303, %v1342
  %v1344 = vmul.f32 %v1019, %v1343
  %1346 = vrot.lane.b32.xlu0 %v1344, 124
  %v1347 = vpop.permute.xlu0 %1346
  %v1349 = vadd.f32 %v1339, %v1347
  %v1350 = vlaneseq
  %v1351 = vshrl.u32 %v1350, 7
  %v1352 = vsub.s32 5, %v1351
  %v1353 = vrot.slane %v1303, %v1352
  %v1354 = vmul.f32 %v1019, %v1353
  %1356 = vrot.lane.b32.xlu0 %v1354, 123
  %v1357 = vpop.permute.xlu0 %1356
  %v1359 = vadd.f32 %v1349, %v1357
  %v1360 = vlaneseq
  %v1361 = vshrl.u32 %v1360, 7
  %v1362 = vsub.s32 6, %v1361
  %v1363 = vrot.slane %v1303, %v1362
  %v1364 = vmul.f32 %v1019, %v1363
  %1366 = vrot.lane.b32.xlu0 %v1364, 122
  %v1367 = vpop.permute.xlu0 %1366
  %v1369 = vadd.f32 %v1359, %v1367
  %v1370 = vlaneseq
  %v1371 = vshrl.u32 %v1370, 7
  %v1372 = vsub.s32 7, %v1371
  %v1373 = vrot.slane %v1303, %v1372
  %v1374 = vmul.f32 %v1019, %v1373
  %1376 = vrot.lane.b32.xlu0 %v1374, 121
  %v1377 = vpop.permute.xlu0 %1376
  %v1379 = vadd.f32 %v1369, %v1377
  %v1380 = vlaneseq
  %v1381 = vshrl.u32 %v1380, 7
  %v1382 = vsub.s32 0, %v1381
  %v1383 = vrot.slane %v1304, %v1382
  %v1384 = vmul.f32 %v1019, %v1383
  %1386 = vrot.lane.b32.xlu0 %v1384, 120
  %v1387 = vpop.permute.xlu0 %1386
  %v1389 = vadd.f32 %v1379, %v1387
  %v1390 = vlaneseq
  %v1391 = vshrl.u32 %v1390, 7
  %v1392 = vsub.s32 1, %v1391
  %v1393 = vrot.slane %v1304, %v1392
  %v1394 = vmul.f32 %v1019, %v1393
  %1396 = vrot.lane.b32.xlu0 %v1394, 119
  %v1397 = vpop.permute.xlu0 %1396
  %v1399 = vadd.f32 %v1389, %v1397
  %v1400 = vlaneseq
  %v1401 = vshrl.u32 %v1400, 7
  %v1402 = vsub.s32 2, %v1401
  %v1403 = vrot.slane %v1304, %v1402
  %v1404 = vmul.f32 %v1019, %v1403
  %1406 = vrot.lane.b32.xlu0 %v1404, 118
  %v1407 = vpop.permute.xlu0 %1406
  %v1409 = vadd.f32 %v1399, %v1407
  %v1410 = vlaneseq
  %v1411 = vshrl.u32 %v1410, 7
  %v1412 = vsub.s32 3, %v1411
  %v1413 = vrot.slane %v1304, %v1412
  %v1414 = vmul.f32 %v1019, %v1413
  %1416 = vrot.lane.b32.xlu0 %v1414, 117
  %v1417 = vpop.permute.xlu0 %1416
  %v1419 = vadd.f32 %v1409, %v1417
  %v1420 = vlaneseq
  %v1421 = vshrl.u32 %v1420, 7
  %v1422 = vsub.s32 4, %v1421
  %v1423 = vrot.slane %v1304, %v1422
  %v1424 = vmul.f32 %v1019, %v1423
  %1426 = vrot.lane.b32.xlu0 %v1424, 116
  %v1427 = vpop.permute.xlu0 %1426
  %v1429 = vadd.f32 %v1419, %v1427
  %v1430 = vlaneseq
  %v1431 = vshrl.u32 %v1430, 7
  %v1432 = vsub.s32 5, %v1431
  %v1433 = vrot.slane %v1304, %v1432
  %v1434 = vmul.f32 %v1019, %v1433
  %1436 = vrot.lane.b32.xlu0 %v1434, 115
  %v1437 = vpop.permute.xlu0 %1436
  %v1439 = vadd.f32 %v1429, %v1437
  %v1440 = vlaneseq
  %v1441 = vshrl.u32 %v1440, 7
  %v1442 = vsub.s32 6, %v1441
  %v1443 = vrot.slane %v1304, %v1442
  %v1444 = vmul.f32 %v1019, %v1443
  %1446 = vrot.lane.b32.xlu0 %v1444, 114
  %v1447 = vpop.permute.xlu0 %1446
  %v1449 = vadd.f32 %v1439, %v1447
  %v1450 = vlaneseq
  %v1451 = vshrl.u32 %v1450, 7
  %v1452 = vsub.s32 7, %v1451
  %v1453 = vrot.slane %v1304, %v1452
  %v1454 = vmul.f32 %v1019, %v1453
  %1456 = vrot.lane.b32.xlu0 %v1454, 113
  %v1457 = vpop.permute.xlu0 %1456
  %v1459 = vadd.f32 %v1449, %v1457
  %v1460 = vadd.f32 %v1459, %v1020
  %vm1461 = vcmp.ge.f32.partialorder %v1460, 0.0
  %v1462 = vmul.f32 %v1460, 0.3
  %v1463 = vsel %vm1461, %v1460, %v1462
  %v1464 = vlaneseq
  %v1465 = vshrl.u32 %v1464, 7
  %v1466 = vsub.s32 0, %v1465
  %v1467 = vrot.slane %v1463, %v1466
  %v1468 = vmul.f32 %v1021, %v1467
  %v1469 = vmul.f32 %v1022, %v1467
  %v1470 = vlaneseq
  %v1471 = vshrl.u32 %v1470, 7
  %v1472 = vsub.s32 1, %v1471
  %v1473 = vrot.slane %v1463, %v1472
  %1475 = vrot.lane.b32.xlu0 %v1473, 1
  %v1476 = vpop.permute.xlu0 %1475
  %v1478 = vmul.f32 %v1021, %v1476
  %v1479 = vmul.f32 %v1022, %v1476
  %1482 = vrot.lane.b32.xlu0 %v1478, 127
  %v1483 = vpop.permute.xlu0 %1482
  %1484 = vrot.lane.b32.xlu0 %v1479, 127
  %v1485 = vpop.permute.xlu0 %1484
  %v1488 = vadd.f32 %v1468, %v1483
  %v1489 = vadd.f32 %v1469, %v1485
  %v1490 = vlaneseq
  %v1491 = vshrl.u32 %v1490, 7
  %v1492 = vsub.s32 2, %v1491
  %v1493 = vrot.slane %v1463, %v1492
  %1495 = vrot.lane.b32.xlu0 %v1493, 2
  %v1496 = vpop.permute.xlu0 %1495
  %v1498 = vmul.f32 %v1021, %v1496
  %v1499 = vmul.f32 %v1022, %v1496
  %1502 = vrot.lane.b32.xlu0 %v1498, 126
  %v1503 = vpop.permute.xlu0 %1502
  %1504 = vrot.lane.b32.xlu0 %v1499, 126
  %v1505 = vpop.permute.xlu0 %1504
  %v1508 = vadd.f32 %v1488, %v1503
  %v1509 = vadd.f32 %v1489, %v1505
  %v1510 = vlaneseq
  %v1511 = vshrl.u32 %v1510, 7
  %v1512 = vsub.s32 3, %v1511
  %v1513 = vrot.slane %v1463, %v1512
  %1515 = vrot.lane.b32.xlu0 %v1513, 3
  %v1516 = vpop.permute.xlu0 %1515
  %v1518 = vmul.f32 %v1021, %v1516
  %v1519 = vmul.f32 %v1022, %v1516
  %1522 = vrot.lane.b32.xlu0 %v1518, 125
  %v1523 = vpop.permute.xlu0 %1522
  %1524 = vrot.lane.b32.xlu0 %v1519, 125
  %v1525 = vpop.permute.xlu0 %1524
  %v1528 = vadd.f32 %v1508, %v1523
  %v1529 = vadd.f32 %v1509, %v1525
  %v1530 = vadd.f32 %v1528, %v1258
  %v1531 = vadd.f32 %v1529, %v1260
  %v1532 = vxor.u32 %v1530, 2147483648
  %v1533 = vxor.u32 %v1531, 2147483648
  %v1534 = vmul.f32 %v1532, 1.442695
  %v1535 = vpow.pop %v1534
  %v1536 = vmul.f32 %v1533, 1.442695
  %v1537 = vpow.pop %v1536
  %v1538 = vadd.f32 %v1535, 1.0
  %v1539 = vadd.f32 %v1537, 1.0
  %v1540 = vrcp.pop %v1538
  %v1541 = vmul.f32 1.0, %v1540
  %v1542 = vrcp.pop %v1539
  %v1543 = vmul.f32 1.0, %v1542
  %1545 = vset.pattern.permute.xlu0 0
  %1546 = vperm.xlu0 %1545, %v1541
  %v1547 = vpop.permute.xlu0 %1546
  %1550 = vset.pattern.permute.xlu0 0
  %1551 = vperm.xlu0 %1550, %v1543
  %v1552 = vpop.permute.xlu0 %1551
  %v1554 = vmul.f32 %v1017, %v1547
  %v1555 = vmul.f32 %v1018, %v1552
  %v1556 = vsel %vm1023, %v1287, %v1554
  %v1557 = vsel %vm1023, %v1288, %v1555
  %v1558 = vld [vmem:[%s8] sm:$0xff]
  %v1559 = vld [vmem:[%s7] sm:$0xff]
  %1561 = vset.pattern.permute.xlu0 0
  %1562 = vperm.xlu0 %1561, %v1559
  %v1563 = vpop.permute.xlu0 %1562
  %v1565 = vlaneseq
  %v1566 = vshrl.u32 %v1565, 7
  %v1567 = vsub.s32 0, %v1566
  %v1568 = vrot.slane %v1556, %v1567
  %v1569 = vmul.f32 %v1563, %v1568
  %1570 = vset.pattern.permute.xlu0 1
  %1571 = vperm.xlu0 %1570, %v1559
  %v1572 = vpop.permute.xlu0 %1571
  %v1574 = vlaneseq
  %v1575 = vshrl.u32 %v1574, 7
  %v1576 = vsub.s32 1, %v1575
  %v1577 = vrot.slane %v1556, %v1576
  %v1578 = vmul.f32 %v1572, %v1577
  %v1579 = vadd.f32 %v1569, %v1578
  %1580 = vset.pattern.permute.xlu0 2
  %1581 = vperm.xlu0 %1580, %v1559
  %v1582 = vpop.permute.xlu0 %1581
  %v1584 = vlaneseq
  %v1585 = vshrl.u32 %v1584, 7
  %v1586 = vsub.s32 2, %v1585
  %v1587 = vrot.slane %v1556, %v1586
  %v1588 = vmul.f32 %v1582, %v1587
  %v1589 = vadd.f32 %v1579, %v1588
  %1590 = vset.pattern.permute.xlu0 3
  %1591 = vperm.xlu0 %1590, %v1559
  %v1592 = vpop.permute.xlu0 %1591
  %v1594 = vlaneseq
  %v1595 = vshrl.u32 %v1594, 7
  %v1596 = vsub.s32 3, %v1595
  %v1597 = vrot.slane %v1556, %v1596
  %v1598 = vmul.f32 %v1592, %v1597
  %v1599 = vadd.f32 %v1589, %v1598
  %1600 = vset.pattern.permute.xlu0 4
  %1601 = vperm.xlu0 %1600, %v1559
  %v1602 = vpop.permute.xlu0 %1601
  %v1604 = vlaneseq
  %v1605 = vshrl.u32 %v1604, 7
  %v1606 = vsub.s32 4, %v1605
  %v1607 = vrot.slane %v1556, %v1606
  %v1608 = vmul.f32 %v1602, %v1607
  %v1609 = vadd.f32 %v1599, %v1608
  %1610 = vset.pattern.permute.xlu0 5
  %1611 = vperm.xlu0 %1610, %v1559
  %v1612 = vpop.permute.xlu0 %1611
  %v1614 = vlaneseq
  %v1615 = vshrl.u32 %v1614, 7
  %v1616 = vsub.s32 5, %v1615
  %v1617 = vrot.slane %v1556, %v1616
  %v1618 = vmul.f32 %v1612, %v1617
  %v1619 = vadd.f32 %v1609, %v1618
  %1620 = vset.pattern.permute.xlu0 6
  %1621 = vperm.xlu0 %1620, %v1559
  %v1622 = vpop.permute.xlu0 %1621
  %v1624 = vlaneseq
  %v1625 = vshrl.u32 %v1624, 7
  %v1626 = vsub.s32 6, %v1625
  %v1627 = vrot.slane %v1556, %v1626
  %v1628 = vmul.f32 %v1622, %v1627
  %v1629 = vadd.f32 %v1619, %v1628
  %1630 = vset.pattern.permute.xlu0 7
  %1631 = vperm.xlu0 %1630, %v1559
  %v1632 = vpop.permute.xlu0 %1631
  %v1634 = vlaneseq
  %v1635 = vshrl.u32 %v1634, 7
  %v1636 = vsub.s32 7, %v1635
  %v1637 = vrot.slane %v1556, %v1636
  %v1638 = vmul.f32 %v1632, %v1637
  %v1639 = vadd.f32 %v1629, %v1638
  %1640 = vset.pattern.permute.xlu0 8
  %1641 = vperm.xlu0 %1640, %v1559
  %v1642 = vpop.permute.xlu0 %1641
  %v1644 = vlaneseq
  %v1645 = vshrl.u32 %v1644, 7
  %v1646 = vsub.s32 0, %v1645
  %v1647 = vrot.slane %v1557, %v1646
  %v1648 = vmul.f32 %v1642, %v1647
  %v1649 = vadd.f32 %v1639, %v1648
  %1650 = vset.pattern.permute.xlu0 9
  %1651 = vperm.xlu0 %1650, %v1559
  %v1652 = vpop.permute.xlu0 %1651
  %v1654 = vlaneseq
  %v1655 = vshrl.u32 %v1654, 7
  %v1656 = vsub.s32 1, %v1655
  %v1657 = vrot.slane %v1557, %v1656
  %v1658 = vmul.f32 %v1652, %v1657
  %v1659 = vadd.f32 %v1649, %v1658
  %1660 = vset.pattern.permute.xlu0 10
  %1661 = vperm.xlu0 %1660, %v1559
  %v1662 = vpop.permute.xlu0 %1661
  %v1664 = vlaneseq
  %v1665 = vshrl.u32 %v1664, 7
  %v1666 = vsub.s32 2, %v1665
  %v1667 = vrot.slane %v1557, %v1666
  %v1668 = vmul.f32 %v1662, %v1667
  %v1669 = vadd.f32 %v1659, %v1668
  %1670 = vset.pattern.permute.xlu0 11
  %1671 = vperm.xlu0 %1670, %v1559
  %v1672 = vpop.permute.xlu0 %1671
  %v1674 = vlaneseq
  %v1675 = vshrl.u32 %v1674, 7
  %v1676 = vsub.s32 3, %v1675
  %v1677 = vrot.slane %v1557, %v1676
  %v1678 = vmul.f32 %v1672, %v1677
  %v1679 = vadd.f32 %v1669, %v1678
  %1680 = vset.pattern.permute.xlu0 12
  %1681 = vperm.xlu0 %1680, %v1559
  %v1682 = vpop.permute.xlu0 %1681
  %v1684 = vlaneseq
  %v1685 = vshrl.u32 %v1684, 7
  %v1686 = vsub.s32 4, %v1685
  %v1687 = vrot.slane %v1557, %v1686
  %v1688 = vmul.f32 %v1682, %v1687
  %v1689 = vadd.f32 %v1679, %v1688
  %1690 = vset.pattern.permute.xlu0 13
  %1691 = vperm.xlu0 %1690, %v1559
  %v1692 = vpop.permute.xlu0 %1691
  %v1694 = vlaneseq
  %v1695 = vshrl.u32 %v1694, 7
  %v1696 = vsub.s32 5, %v1695
  %v1697 = vrot.slane %v1557, %v1696
  %v1698 = vmul.f32 %v1692, %v1697
  %v1699 = vadd.f32 %v1689, %v1698
  %1700 = vset.pattern.permute.xlu0 14
  %1701 = vperm.xlu0 %1700, %v1559
  %v1702 = vpop.permute.xlu0 %1701
  %v1704 = vlaneseq
  %v1705 = vshrl.u32 %v1704, 7
  %v1706 = vsub.s32 6, %v1705
  %v1707 = vrot.slane %v1557, %v1706
  %v1708 = vmul.f32 %v1702, %v1707
  %v1709 = vadd.f32 %v1699, %v1708
  %1710 = vset.pattern.permute.xlu0 15
  %1711 = vperm.xlu0 %1710, %v1559
  %v1712 = vpop.permute.xlu0 %1711
  %v1714 = vlaneseq
  %v1715 = vshrl.u32 %v1714, 7
  %v1716 = vsub.s32 7, %v1715
  %v1717 = vrot.slane %v1557, %v1716
  %v1718 = vmul.f32 %v1712, %v1717
  %v1719 = vadd.f32 %v1709, %v1718
  %1721 = vset.pattern.permute.xlu0 0
  %1722 = vperm.xlu0 %1721, %v1558
  %v1723 = vpop.permute.xlu0 %1722
  %v1725 = vadd.f32 %v1719, %v1723
  %1726 = vadd.xlane.f32.xlu0 %v1725
  %v1727 = vpop.xlane.xlu0 %1726
  %v1728 = vmul.f32 %v1725, %v1725
  %1729 = vadd.xlane.f32.xlu0 %v1728
  %v1730 = vpop.xlane.xlu0 %1729
  %v1731 = vmul.f32 %v1727, 0.0078125
  %v1732 = vmul.f32 %v1730, 0.0078125
  %v1733 = vmul.f32 %v1731, %v1731
  %v1734 = vsub.f32 %v1732, %v1733
  %v1735 = vmax.f32 %v1734, 0.0
  %v1736 = vadd.f32 %v1735, 0.001
  %v1737 = vrsqrt.pop %v1736
  %v1738 = vmul.f32 %v1737, %v1558
  %v1739 = vmul.f32 %v1731, %v1738
  %1741 = vrot.lane.b32.xlu0 %v1739, 1
  %v1742 = vpop.permute.xlu0 %1741
  %v1744 = vsub.f32 %v1558, %v1742
  %1746 = vset.pattern.permute.xlu0 1
  %1747 = vperm.xlu0 %1746, %v1738
  %v1748 = vpop.permute.xlu0 %1747
  %v1750 = vmul.f32 %v1725, %v1748
  %1752 = vset.pattern.permute.xlu0 2
  %1753 = vperm.xlu0 %1752, %v1744
  %v1754 = vpop.permute.xlu0 %1753
  %v1756 = vadd.f32 %v1750, %v1754
  %1757 = vst [vmem:[%s9] sm:$0xff] %v1756
  // Predicated region
  $region38: #{block_forward.1} parent=0 // pred_check
    _
  $region39: #{block_forward.1} parent=0 // pred_check_branch
    %1759 = sbr.rel (0) target = $region41
  $region40: #{block_forward.1} parent=0 // pred_region
    _
  $region41: #{block_forward.1} parent=0 // pred_fallthru
    _
  // Predicated region
  $region42: #{block_forward.1} parent=0 // pred_check
    _
  $region43: #{block_forward.1} parent=0 // pred_check_branch
    %1761 = sbr.rel (0) target = $region45
  $region44: #{block_forward.1} parent=0 // pred_region
    _
  $region45: #{block_forward.1} parent=0 // pred_fallthru
    _

</llo_original>
